<compile_context>
chip_gen: v7x
topology: tpu7x:2x2x1
jax: 0.10.0
libtpu: 0.0.40
codegen_flags: <defaults>
</compile_context>

<pallas_src>
import functools
import math

import jax
import jax.numpy as jnp
from jax import lax
from jax.experimental import pallas as pl
from jax.experimental.pallas import tpu as pltpu


def _round_up(x, n):
    return ((x + n - 1) // n) * n


def _gram_kernel(w_ref, pi_ref, out_ref):
    """One reduction step over a tile of the sample (m) axis.

    w_ref  : (p8, tm)          feature-major W tile (lanes = samples)
    pi_ref : (kk_pad, tm)      membership weights of every (padded) class
    out_ref: (p8, kk_pad*p8)   lane-dense Gram slab for this partial,
                               accumulated in place across the reduction axis.
    """
    km = pl.program_id(1)

    w = w_ref[...]                            # (p8, tm)
    pi = pi_ref[...]                          # (kk_pad, tm)
    kk_pad, tm = pi.shape
    p8 = w.shape[0]

    # VPU broadcast-multiply with the sample axis in lanes, then fuse the class
    # axis into the MXU's N dimension: a single (p8, tm) x (tm, kk_pad*p8)
    # matmul per tile.  The reshape only merges sublane-major dims (free).
    wp = (pi[:, None, :] * w[None, :, :]).reshape(kk_pad * p8, tm)

    # contrib[i, j*p8 + q] = sum_t pi[j, t] * w[i, t] * w[q, t]
    contrib = lax.dot_general(
        w, wp,
        dimension_numbers=(((1,), (1,)), ((), ())),   # contract last dims
        preferred_element_type=jnp.float32,
        precision=lax.Precision.HIGHEST)              # explicit: true-f32 Grams

    @pl.when(km == 0)
    def _():
        out_ref[...] = contrib

    @pl.when(km > 0)
    def _():
        out_ref[...] += contrib


def weighted_grams(W, Pi_aug, tm_cap=4096, wp_vmem_bytes=4 * 1024 * 1024):
    """W: (p, m), Pi_aug: (kk, m) -> grams: (kk, p, p),
    grams[j] = W @ diag(Pi_aug[j]) @ W.T."""
    p, m = W.shape
    kk = Pi_aug.shape[0]

    p8 = _round_up(p, 8)                      # sublane-aligned feature rows
    # Smallest number of classes whose fused class*p8 width is lane-dense.
    g0 = 128 // math.gcd(p8, 128)
    kk_pad = _round_up(kk, g0)
    ncols = kk_pad * p8                       # multiple of 128 -> unmasked stores

    # Sample-axis tile: as large as possible (multiple of 256 so MXU K-chunks
    # are full), clamped so the in-kernel (ncols, tm) intermediate stays small
    # even for large class counts (keeps every generation's VMEM budget happy).
    tm_budget = max(256, (wp_vmem_bytes // (ncols * 4)) // 256 * 256)
    tm = min(_round_up(m, 256), tm_cap, tm_budget)

    n_steps = -(-m // tm)
    # Split the reduction into two "parallel" partial slabs when there is more
    # than one step: v7x's second TensorCore gets half the work, while W / Pi
    # are still read exactly once from HBM (partials summed in the wrapper).
    n_partials = 2 if n_steps >= 2 else 1
    m_pad = _round_up(m, n_partials * tm)
    steps_per_partial = (m_pad // tm) // n_partials

    W = W.astype(jnp.float32)
    Pi_aug = Pi_aug.astype(jnp.float32)

    # Pad only when needed; padded rows/columns contribute nothing because the
    # matching Pi entries are zero.
    if p8 != p or m_pad != m:
        W_p = jnp.zeros((p8, m_pad), jnp.float32).at[:p, :m].set(W)
    else:
        W_p = W
    if kk_pad != kk or m_pad != m:
        Pi_p = jnp.zeros((kk_pad, m_pad), jnp.float32).at[:kk, :m].set(Pi_aug)
    else:
        Pi_p = Pi_aug

    out = pl.pallas_call(
        _gram_kernel,
        out_shape=jax.ShapeDtypeStruct((n_partials, p8, ncols), jnp.float32),
        grid_spec=pltpu.PrefetchScalarGridSpec(
            num_scalar_prefetch=0,
            grid=(n_partials, steps_per_partial),
            in_specs=[
                pl.BlockSpec(
                    (p8, tm),
                    lambda part, km: (0, part * steps_per_partial + km)),
                pl.BlockSpec(
                    (kk_pad, tm),
                    lambda part, km: (0, part * steps_per_partial + km)),
            ],
            out_specs=pl.BlockSpec(
                (None, p8, ncols), lambda part, km: (part, 0, 0)),
        ),
        compiler_params=pltpu.CompilerParams(
            dimension_semantics=("parallel", "arbitrary")),
    )(W_p, Pi_p)

    slab = out[0] if n_partials == 1 else jnp.sum(out, axis=0)   # (p8, ncols)
    grams = slab.reshape(p8, kk_pad, p8).transpose(1, 0, 2)      # (kk_pad, p8, p8)
    return grams[:kk, :p, :p]


def _logdet(mats):
    # TODO(synk): logdet (LU factorization) has no Pallas lowering; computed
    # with XLA's batched slogdet on the tiny (p, p) Gram matrices.  slogdet is
    # used (instead of Cholesky) so non-PSD inputs behave like torch.logdet.
    sign, logabs = jnp.linalg.slogdet(mats)
    return jnp.where(sign > 0, logabs, jnp.nan)


def geometric_mcr2_loss(X, A, sample_key, num_node_batch,
                        gam1=1.0, gam2=1.0, eps=0.01):
    """JAX/Pallas port of GeometricMaximalCodingRateReduction.forward."""
    m, p = X.shape
    k = num_node_batch

    # np.random.randint row selection of A (with replacement), deterministic
    # via a JAX PRNG key.
    idx = jax.random.randint(sample_key, (k,), 0, A.shape[0])
    Pi = A[idx, :].astype(jnp.float32)            # (k, m)
    W = X.T.astype(jnp.float32)                   # (p, m)

    # Append an all-ones row so the same fused kernel yields W @ W.T as gram[k].
    Pi_aug = jnp.concatenate([Pi, jnp.ones((1, m), jnp.float32)], axis=0)
    grams = weighted_grams(W, Pi_aug)             # (k+1, p, p)
    G_full = grams[k]                             # W @ W.T
    G_cls = grams[:k]                             # W @ diag(Pi_j) @ W.T

    I = jnp.eye(p, dtype=jnp.float32)

    # Discriminative term: logdet(I + gam1 * p/(m*eps) * W W^T) / 2
    scalar_d = p / (m * eps)
    discrimn = _logdet(I + gam1 * scalar_d * G_full) / 2.0

    # Compressive term.
    trPi = jnp.sum(Pi, axis=1) + 1e-08            # (k,)
    d_bar = jnp.sum(Pi) / k
    scal = p / (trPi * eps)                       # (k,)
    mats = I[None, :, :] + scal[:, None, None] * G_cls
    logdets = _logdet(mats)                       # (k,)
    compress = jnp.sum(logdets * trPi / m) / (2.0 * d_bar)

    return -gam2 * discrimn + compress


if __name__ == "__main__":
    key = jax.random.PRNGKey(0)
    kx, ka, ki = jax.random.split(key, 3)

    m, p = 256, 32          # samples, features
    N = 16                  # rows of A
    num_node_batch = 4      # k

    X = jax.random.normal(kx, (m, p), dtype=jnp.float32)
    A = jax.random.uniform(ka, (N, m), dtype=jnp.float32)

    # Correctness check of the fused Pallas Gram kernel against plain XLA.
    idx = jax.random.randint(ki, (num_node_batch,), 0, A.shape[0])
    Pi_aug = jnp.concatenate(
        [A[idx, :], jnp.ones((1, m), jnp.float32)], axis=0)
    g_pallas = weighted_grams(X.T, Pi_aug)
    g_ref = jnp.einsum("jt,pt,qt->jpq", Pi_aug, X.T, X.T,
                       precision=lax.Precision.HIGHEST)
    assert jnp.allclose(g_pallas, g_ref, rtol=1e-4, atol=1e-4), "gram mismatch"

    loss = geometric_mcr2_loss(X, A, ki, num_node_batch)
    jax.block_until_ready(loss)
    assert bool(jnp.isfinite(loss))
    print("KERNEL_OK")
</pallas_src>

<mosaic_0001>
module attributes {stable_mosaic.version = 11 : i64} {
  func.func @_gram_kernel(%arg0: i32, %arg1: i32, %arg2: memref<32x256xf32, #tpu.memory_space<vmem>>, %arg3: memref<8x256xf32, #tpu.memory_space<vmem>>, %arg4: memref<1x32x256xf32, #tpu.memory_space<vmem>>) attributes {dimension_semantics = [#tpu.dimension_semantics<parallel>, #tpu.dimension_semantics<arbitrary>], iteration_bounds = array<i64: 1, 1>, scalar_prefetch = 0 : i64, scratch_operands = 0 : i64, tpu.core_type = #tpu.core_type<tc>, window_params = [{transform_indices = @transform_0, window_bounds = array<i64: 32, 256>}, {transform_indices = @transform_1, window_bounds = array<i64: 8, 256>}, {transform_indices = @transform_2, window_bounds = array<i64: 1, 32, 256>}]} {
    %c0 = arith.constant 0 : index
    %c0_0 = arith.constant 0 : index
    %0 = vector.load %arg2[%c0, %c0_0] : memref<32x256xf32, #tpu.memory_space<vmem>>, vector<32x256xf32>
    %c0_1 = arith.constant 0 : index
    %c0_2 = arith.constant 0 : index
    %1 = vector.load %arg3[%c0_1, %c0_2] : memref<8x256xf32, #tpu.memory_space<vmem>>, vector<8x256xf32>
    %2 = vector.shape_cast %1 : vector<8x256xf32> to vector<8x1x256xf32>
    %3 = vector.shape_cast %0 : vector<32x256xf32> to vector<1x32x256xf32>
    %4 = vector.broadcast %2 : vector<8x1x256xf32> to vector<8x32x256xf32>
    %5 = vector.broadcast %3 : vector<1x32x256xf32> to vector<8x32x256xf32>
    %6 = arith.mulf %4, %5 : vector<8x32x256xf32>
    %7 = vector.shape_cast %6 : vector<8x32x256xf32> to vector<256x256xf32>
    %cst = arith.constant dense<0.000000e+00> : vector<32x256xf32>
    %8 = tpu.matmul %0, %7, %cst {dimension_numbers = #tpu.dot_dimension_numbers<[1], [1], [0], [0], [0, 0, 1, 0], [], []>, precision = #tpu.contract_precision<fp32>} : vector<32x256xf32>, vector<256x256xf32>, vector<32x256xf32> -> vector<32x256xf32>
    %c0_i32 = arith.constant 0 : i32
    %9 = arith.cmpi eq, %arg1, %c0_i32 : i32
    %10 = arith.extui %9 : i1 to i32
    %c0_i32_3 = arith.constant 0 : i32
    %11 = arith.cmpi ne, %10, %c0_i32_3 : i32
    scf.if %11 {
      %c0_6 = arith.constant 0 : index
      %c0_7 = arith.constant 0 : index
      %c0_8 = arith.constant 0 : index
      %15 = vector.load %arg4[%c0_6, %c0_7, %c0_8] : memref<1x32x256xf32, #tpu.memory_space<vmem>>, vector<1x32x256xf32>
      %16 = vector.shape_cast %15 : vector<1x32x256xf32> to vector<32x256xf32>
      %17 = vector.shape_cast %8 : vector<32x256xf32> to vector<1x32x256xf32>
      tpu.vector_store %arg4[%c0_6, %c0_7, %c0_8], %17 {strides = array<i32>} : memref<1x32x256xf32, #tpu.memory_space<vmem>>, vector<1x32x256xf32>,
    } else {
    }
    %c0_i32_4 = arith.constant 0 : i32
    %12 = arith.cmpi sgt, %arg1, %c0_i32_4 : i32
    %13 = arith.extui %12 : i1 to i32
    %c0_i32_5 = arith.constant 0 : i32
    %14 = arith.cmpi ne, %13, %c0_i32_5 : i32
    scf.if %14 {
      %c0_6 = arith.constant 0 : index
      %c0_7 = arith.constant 0 : index
      %c0_8 = arith.constant 0 : index
      %15 = vector.load %arg4[%c0_6, %c0_7, %c0_8] : memref<1x32x256xf32, #tpu.memory_space<vmem>>, vector<1x32x256xf32>
      %16 = vector.shape_cast %15 : vector<1x32x256xf32> to vector<32x256xf32>
      %17 = arith.addf %16, %8 : vector<32x256xf32>
      %c0_9 = arith.constant 0 : index
      %c0_10 = arith.constant 0 : index
      %c0_11 = arith.constant 0 : index
      %18 = vector.load %arg4[%c0_9, %c0_10, %c0_11] : memref<1x32x256xf32, #tpu.memory_space<vmem>>, vector<1x32x256xf32>
      %19 = vector.shape_cast %18 : vector<1x32x256xf32> to vector<32x256xf32>
      %20 = vector.shape_cast %17 : vector<32x256xf32> to vector<1x32x256xf32>
      tpu.vector_store %arg4[%c0_9, %c0_10, %c0_11], %20 {strides = array<i32>} : memref<1x32x256xf32, #tpu.memory_space<vmem>>, vector<1x32x256xf32>,
    } else {
    }
    return
  }
  func.func @transform_0(%arg0: i32, %arg1: i32) -> (i32, i32) {
    %c1_i32 = arith.constant 1 : i32
    %0 = arith.muli %arg0, %c1_i32 : i32
    %1 = arith.addi %0, %arg1 : i32
    %c0_i32 = arith.constant 0 : i32
    %c0_i32_0 = arith.constant 0 : i32
    return %c0_i32, %1 : i32, i32
  }
  func.func @transform_1(%arg0: i32, %arg1: i32) -> (i32, i32) {
    %c1_i32 = arith.constant 1 : i32
    %0 = arith.muli %arg0, %c1_i32 : i32
    %1 = arith.addi %0, %arg1 : i32
    %c0_i32 = arith.constant 0 : i32
    %c0_i32_0 = arith.constant 0 : i32
    return %c0_i32, %1 : i32, i32
  }
  func.func @transform_2(%arg0: i32, %arg1: i32) -> (i32, i32, i32) {
    %c0_i32 = arith.constant 0 : i32
    %c0_i32_0 = arith.constant 0 : i32
    %c0_i32_1 = arith.constant 0 : i32
    return %arg0, %c0_i32, %c0_i32_0 : i32, i32, i32
  }
}

</mosaic_0001>

<llo_original>
// kernel: tpu_custom_call.1
$region0: #{tpu_custom_call.1}
  #allocation0 [shape = 'u32[]', space=smem, size = 0x4, offset = 0x4, fixed_abs, tag = 'smem constant byte address 0x4 - core index']
  #allocation1 [shape = 'u32[144,128]{1,0:T(1,128)}', space=vmem, size = 0x12000, scoped, tag = 'internal scratch']
  %s0 = inlined_call_operand.hbm [shape: f32[32,256], index: 0, kind: input, shape index: {}]
  %s1 = inlined_call_operand.hbm [shape: f32[8,256], index: 1, kind: input, shape index: {}]
  %s2 = inlined_call_operand.hbm [shape: f32[1,32,256], index: 2, kind: output, shape index: {}]
  %s3 = sld [smem:[#allocation0]]
  $region34: #{tpu_custom_call.1} parent=0
    _
  %s5 = ssub.s32 1, %s3
  %s6 = scalar_select 0, %s5, %s3
  $region1: #{tpu_custom_call.1} parent=0
    #allocation2 [shape = 'u8[32768]{0}', space=vmem, size = 0x8000, scoped, tag = 'input window, operand 0, single buffered']
    #allocation3 [shape = 's32[1]{0}', space=sflag, size = 0x4, scoped, tag = 'scoped memory for tpu_custom_call.1']
    #allocation4 [shape = 's32[1]{0}', space=sflag, size = 0x4, scoped, tag = 'scoped memory for tpu_custom_call.1']
    #allocation5 [shape = 'u8[8192]{0}', space=vmem, size = 0x2000, scoped, tag = 'input window, operand 1, single buffered']
    #allocation6 [shape = 's32[1]{0}', space=sflag, size = 0x4, scoped, tag = 'scoped memory for tpu_custom_call.1']
    #allocation7 [shape = 'u8[32768]{0}', space=vmem, size = 0x8000, scoped, tag = 'output window, operand 0, single buffered']
    %7 = vsyncpa [#allocation3], 0
    %8 = vsyncpa [#allocation6], 0
    %9 = vsyncpa [#allocation4], 0
    // Predicated region
    $region2: #{tpu_custom_call.1} parent=1 // pred_check
      _
    $region3: #{tpu_custom_call.1} parent=1 // pred_check_branch
      %11 = sbr.rel (0) target = $region5
    $region4: #{tpu_custom_call.1} parent=1 // pred_region
      %s12 = sadd.s32 0, 0
      %s13 = smul.u32 2, %s12
      %s15 = ssub.s32 1024, 1024
      %16 = vsyncadd [#allocation3], %s15
      %s17 = smul.addr %s13, 128
      %s18 = scalar_lea.hbm %s0, %s17
      %s19 = sshll.u32 [#allocation2], 4
      %s20 = int_to_ptr.vmem [resolvable:$true] %s19
      %25 = dma.hbm_to_vmem [thread:$0]  %s18, 1024, %s20, [#allocation3], 256, 256, 16
    $region5: #{tpu_custom_call.1} parent=1 // pred_fallthru
      _
    // Predicated region
    $region6: #{tpu_custom_call.1} parent=1 // pred_check
      _
    $region7: #{tpu_custom_call.1} parent=1 // pred_check_branch
      %27 = sbr.rel (0) target = $region9
    $region8: #{tpu_custom_call.1} parent=1 // pred_region
      %s28 = sadd.s32 0, 0
      %s29 = smul.u32 2, %s28
      %s31 = ssub.s32 256, 256
      %32 = vsyncadd [#allocation6], %s31
      %s33 = smul.addr %s29, 128
      %s34 = scalar_lea.hbm %s1, %s33
      %s36 = sshll.u32 [#allocation5], 4
      %s37 = int_to_ptr.vmem [resolvable:$true] %s36
      %39 = dma.hbm_to_vmem [thread:$0]  %s34, 256, %s37, [#allocation6]
    $region9: #{tpu_custom_call.1} parent=1 // pred_fallthru
      _
    // Predicated region
    $region10: #{tpu_custom_call.1} parent=1 // pred_check
      _
    $region11: #{tpu_custom_call.1} parent=1 // pred_check_branch
      %41 = sbr.rel (0) target = $region13
    $region12: #{tpu_custom_call.1} parent=1 // pred_region
      %42 = dma.done [#allocation3], 1024
    $region13: #{tpu_custom_call.1} parent=1 // pred_fallthru
      _
    // Predicated region
    $region14: #{tpu_custom_call.1} parent=1 // pred_check
      _
    $region15: #{tpu_custom_call.1} parent=1 // pred_check_branch
      %44 = sbr.rel (0) target = $region17
    $region16: #{tpu_custom_call.1} parent=1 // pred_region
      %45 = dma.done [#allocation6], 256
    $region17: #{tpu_custom_call.1} parent=1 // pred_fallthru
      _
    %s46 = sadd.s32 0, 0
    %s47 = smul.u32 2, %s46
    %s48 = sadd.s32 0, 0
    %s49 = smul.u32 2, %s48
    %v50 = vld [vmem:[#allocation2] sm:$0xff]
    %v51 = vld [vmem:[#allocation2 + $0x8] sm:$0xff]
    %v52 = vld [vmem:[#allocation2 + $0x10] sm:$0xff]
    %v53 = vld [vmem:[#allocation2 + $0x18] sm:$0xff]
    %v54 = vld [vmem:[#allocation2 + $0x20] sm:$0xff]
    %v55 = vld [vmem:[#allocation2 + $0x28] sm:$0xff]
    %v56 = vld [vmem:[#allocation2 + $0x30] sm:$0xff]
    %v57 = vld [vmem:[#allocation2 + $0x38] sm:$0xff]
    %v58 = vld [vmem:[#allocation5] sm:$0xff]
    %v59 = vld [vmem:[#allocation5 + $0x8] sm:$0xff]
    %v62 = vcombine.low %v58, %v59
    %v63 = vcombine.high %v58, %v59
    %v65 = vunpack.c.l.s4 1966171168
    %v66 = vunpack.c.0.s8 %v65
    %v67 = vlaneseq
    %v68 = vshrl.u32 %v67, 7
    %v69 = vsub.s32 %v66, %v68
    %v70 = vrot.slane %v62, %v69
    %v72 = vunpack.c.l.s4 1966171168
    %v73 = vunpack.c.0.s8 %v72
    %v74 = vlaneseq
    %v75 = vshrl.u32 %v74, 7
    %v76 = vsub.s32 %v73, %v75
    %v77 = vrot.slane %v63, %v76
    %v78 = vcombine.high %v70, %v70
    %v79 = vcombine.high %v77, %v77
    %v81 = vunpack.c.l.s4 1966171168
    %v82 = vunpack.c.0.s8 %v81
    %v83 = vlaneseq
    %v84 = vshrl.u32 %v83, 7
    %v85 = vsub.s32 %v82, %v84
    %v86 = vrot.slane %v70, %v85
    %v88 = vunpack.c.l.s4 1966171168
    %v89 = vunpack.c.0.s8 %v88
    %v90 = vlaneseq
    %v91 = vshrl.u32 %v90, 7
    %v92 = vsub.s32 %v89, %v91
    %v93 = vrot.slane %v77, %v92
    %v95 = vunpack.c.l.s4 1966171168
    %v96 = vunpack.c.0.s8 %v95
    %v97 = vlaneseq
    %v98 = vshrl.u32 %v97, 7
    %v99 = vsub.s32 %v96, %v98
    %v100 = vrot.slane %v78, %v99
    %v102 = vunpack.c.l.s4 1966171168
    %v103 = vunpack.c.0.s8 %v102
    %v104 = vlaneseq
    %v105 = vshrl.u32 %v104, 7
    %v106 = vsub.s32 %v103, %v105
    %v107 = vrot.slane %v79, %v106
    %v108 = vcombine.high %v86, %v86
    %v109 = vcombine.high %v93, %v93
    %v110 = vcombine.high %v100, %v100
    %v111 = vcombine.high %v107, %v107
    %v112 = vlaneseq
    %v113 = vshrl.u32 %v112, 7
    %v114 = vsub.s32 0, %v113
    %v115 = vrot.slane %v86, %v114
    %v116 = vlaneseq
    %v117 = vshrl.u32 %v116, 7
    %v118 = vsub.s32 1, %v117
    %v119 = vrot.slane %v86, %v118
    %v120 = vlaneseq
    %v121 = vshrl.u32 %v120, 7
    %v122 = vsub.s32 0, %v121
    %v123 = vrot.slane %v100, %v122
    %v124 = vlaneseq
    %v125 = vshrl.u32 %v124, 7
    %v126 = vsub.s32 1, %v125
    %v127 = vrot.slane %v100, %v126
    %v128 = vlaneseq
    %v129 = vshrl.u32 %v128, 7
    %v130 = vsub.s32 0, %v129
    %v131 = vrot.slane %v108, %v130
    %v132 = vlaneseq
    %v133 = vshrl.u32 %v132, 7
    %v134 = vsub.s32 1, %v133
    %v135 = vrot.slane %v108, %v134
    %v136 = vlaneseq
    %v137 = vshrl.u32 %v136, 7
    %v138 = vsub.s32 0, %v137
    %v139 = vrot.slane %v110, %v138
    %v140 = vlaneseq
    %v141 = vshrl.u32 %v140, 7
    %v142 = vsub.s32 1, %v141
    %v143 = vrot.slane %v110, %v142
    %v144 = vlaneseq
    %v145 = vshrl.u32 %v144, 7
    %v146 = vsub.s32 0, %v145
    %v147 = vrot.slane %v93, %v146
    %v148 = vlaneseq
    %v149 = vshrl.u32 %v148, 7
    %v150 = vsub.s32 1, %v149
    %v151 = vrot.slane %v93, %v150
    %v152 = vlaneseq
    %v153 = vshrl.u32 %v152, 7
    %v154 = vsub.s32 0, %v153
    %v155 = vrot.slane %v107, %v154
    %v156 = vlaneseq
    %v157 = vshrl.u32 %v156, 7
    %v158 = vsub.s32 1, %v157
    %v159 = vrot.slane %v107, %v158
    %v160 = vlaneseq
    %v161 = vshrl.u32 %v160, 7
    %v162 = vsub.s32 0, %v161
    %v163 = vrot.slane %v109, %v162
    %v164 = vlaneseq
    %v165 = vshrl.u32 %v164, 7
    %v166 = vsub.s32 1, %v165
    %v167 = vrot.slane %v109, %v166
    %v168 = vlaneseq
    %v169 = vshrl.u32 %v168, 7
    %v170 = vsub.s32 0, %v169
    %v171 = vrot.slane %v111, %v170
    %v172 = vlaneseq
    %v173 = vshrl.u32 %v172, 7
    %v174 = vsub.s32 1, %v173
    %v175 = vrot.slane %v111, %v174
    %v192 = vmul.f32 %v115, %v50
    %v193 = vmul.f32 %v119, %v51
    %v194 = vmul.f32 %v115, %v52
    %v195 = vmul.f32 %v119, %v53
    %v196 = vmul.f32 %v115, %v54
    %v197 = vmul.f32 %v119, %v55
    %v198 = vmul.f32 %v115, %v56
    %v199 = vmul.f32 %v119, %v57
    %v200 = vmul.f32 %v123, %v50
    %v201 = vmul.f32 %v127, %v51
    %v202 = vmul.f32 %v123, %v52
    %v203 = vmul.f32 %v127, %v53
    %v204 = vmul.f32 %v123, %v54
    %v205 = vmul.f32 %v127, %v55
    %v206 = vmul.f32 %v123, %v56
    %v207 = vmul.f32 %v127, %v57
    %v208 = vmul.f32 %v131, %v50
    %v209 = vmul.f32 %v135, %v51
    %v210 = vmul.f32 %v131, %v52
    %v211 = vmul.f32 %v135, %v53
    %v212 = vmul.f32 %v131, %v54
    %v213 = vmul.f32 %v135, %v55
    %v214 = vmul.f32 %v131, %v56
    %v215 = vmul.f32 %v135, %v57
    %v216 = vmul.f32 %v139, %v50
    %v217 = vmul.f32 %v143, %v51
    %v218 = vmul.f32 %v139, %v52
    %v219 = vmul.f32 %v143, %v53
    %v220 = vmul.f32 %v139, %v54
    %v221 = vmul.f32 %v143, %v55
    %v222 = vmul.f32 %v139, %v56
    %v223 = vmul.f32 %v143, %v57
    %v224 = vmul.f32 %v147, %v50
    %v225 = vmul.f32 %v151, %v51
    %v226 = vmul.f32 %v147, %v52
    %v227 = vmul.f32 %v151, %v53
    %v228 = vmul.f32 %v147, %v54
    %v229 = vmul.f32 %v151, %v55
    %v230 = vmul.f32 %v147, %v56
    %v231 = vmul.f32 %v151, %v57
    %v232 = vmul.f32 %v155, %v50
    %v233 = vmul.f32 %v159, %v51
    %v234 = vmul.f32 %v155, %v52
    %v235 = vmul.f32 %v159, %v53
    %v236 = vmul.f32 %v155, %v54
    %v237 = vmul.f32 %v159, %v55
    %v238 = vmul.f32 %v155, %v56
    %v239 = vmul.f32 %v159, %v57
    %v240 = vmul.f32 %v163, %v50
    %v241 = vmul.f32 %v167, %v51
    %v242 = vmul.f32 %v163, %v52
    %v243 = vmul.f32 %v167, %v53
    %v244 = vmul.f32 %v163, %v54
    %v245 = vmul.f32 %v167, %v55
    %v246 = vmul.f32 %v163, %v56
    %v247 = vmul.f32 %v167, %v57
    %v248 = vmul.f32 %v171, %v50
    %v249 = vmul.f32 %v175, %v51
    %v250 = vmul.f32 %v171, %v52
    %v251 = vmul.f32 %v175, %v53
    %v252 = vmul.f32 %v171, %v54
    %v253 = vmul.f32 %v175, %v55
    %v254 = vmul.f32 %v171, %v56
    %v255 = vmul.f32 %v175, %v57
    %v256 = vand.u32 %v193, 4294901760
    %257 = vmatprep.subr.mxu0 %v256
    %v258 = vand.u32 %v192, 4294901760
    %259 = vmatpush1.xpose.msra.mxu0 %v258
    %v260 = vand.u32 %v195, 4294901760
    %261 = vmatprep.subr.mxu0 %v260
    %v262 = vand.u32 %v194, 4294901760
    %263 = vmatpush1.xpose.msra.mxu0 %v262
    %v264 = vand.u32 %v197, 4294901760
    %265 = vmatprep.subr.mxu0 %v264
    %v266 = vand.u32 %v196, 4294901760
    %267 = vmatpush1.xpose.msra.mxu0 %v266
    %v268 = vand.u32 %v199, 4294901760
    %269 = vmatprep.subr.mxu0 %v268
    %v270 = vand.u32 %v198, 4294901760
    %271 = vmatpush1.xpose.msra.mxu0 %v270
    %v272 = vand.u32 %v201, 4294901760
    %273 = vmatprep.subr.mxu0 %v272
    %v274 = vand.u32 %v200, 4294901760
    %275 = vmatpush1.xpose.msra.mxu0 %v274
    %v276 = vand.u32 %v203, 4294901760
    %277 = vmatprep.subr.mxu0 %v276
    %v278 = vand.u32 %v202, 4294901760
    %279 = vmatpush1.xpose.msra.mxu0 %v278
    %v280 = vand.u32 %v205, 4294901760
    %281 = vmatprep.subr.mxu0 %v280
    %v282 = vand.u32 %v204, 4294901760
    %283 = vmatpush1.xpose.msra.mxu0 %v282
    %v284 = vand.u32 %v207, 4294901760
    %285 = vmatprep.subr.mxu0 %v284
    %v286 = vand.u32 %v206, 4294901760
    %287 = vmatpush1.xpose.msra.mxu0 %v286
    %v288 = vand.u32 %v209, 4294901760
    %289 = vmatprep.subr.mxu0 %v288
    %v290 = vand.u32 %v208, 4294901760
    %291 = vmatpush1.xpose.msra.mxu0 %v290
    %v292 = vand.u32 %v211, 4294901760
    %293 = vmatprep.subr.mxu0 %v292
    %v294 = vand.u32 %v210, 4294901760
    %295 = vmatpush1.xpose.msra.mxu0 %v294
    %v296 = vand.u32 %v213, 4294901760
    %297 = vmatprep.subr.mxu0 %v296
    %v298 = vand.u32 %v212, 4294901760
    %299 = vmatpush1.xpose.msra.mxu0 %v298
    %v300 = vand.u32 %v215, 4294901760
    %301 = vmatprep.subr.mxu0 %v300
    %v302 = vand.u32 %v214, 4294901760
    %303 = vmatpush1.xpose.msra.mxu0 %v302
    %v304 = vand.u32 %v217, 4294901760
    %305 = vmatprep.subr.mxu0 %v304
    %v306 = vand.u32 %v216, 4294901760
    %307 = vmatpush1.xpose.msra.mxu0 %v306
    %v308 = vand.u32 %v219, 4294901760
    %309 = vmatprep.subr.mxu0 %v308
    %v310 = vand.u32 %v218, 4294901760
    %311 = vmatpush1.xpose.msra.mxu0 %v310
    %v312 = vand.u32 %v221, 4294901760
    %313 = vmatprep.subr.mxu0 %v312
    %v314 = vand.u32 %v220, 4294901760
    %315 = vmatpush1.xpose.msra.mxu0 %v314
    %v316 = vand.u32 %v223, 4294901760
    %317 = vmatprep.subr.mxu0 %v316
    %v318 = vand.u32 %v222, 4294901760
    %319 = vmatpush1.xpose.msra.mxu0 %v318
    %v320 = vand.u32 %v225, 4294901760
    %321 = vmatprep.subr.mxu0 %v320
    %v322 = vand.u32 %v224, 4294901760
    %323 = vmatpush1.xpose.msra.mxu0 %v322
    %v324 = vand.u32 %v227, 4294901760
    %325 = vmatprep.subr.mxu0 %v324
    %v326 = vand.u32 %v226, 4294901760
    %327 = vmatpush1.xpose.msra.mxu0 %v326
    %v328 = vand.u32 %v229, 4294901760
    %329 = vmatprep.subr.mxu0 %v328
    %v330 = vand.u32 %v228, 4294901760
    %331 = vmatpush1.xpose.msra.mxu0 %v330
    %v332 = vand.u32 %v231, 4294901760
    %333 = vmatprep.subr.mxu0 %v332
    %v334 = vand.u32 %v230, 4294901760
    %335 = vmatpush1.xpose.msra.mxu0 %v334
    %v336 = vand.u32 %v233, 4294901760
    %337 = vmatprep.subr.mxu0 %v336
    %v338 = vand.u32 %v232, 4294901760
    %339 = vmatpush1.xpose.msra.mxu0 %v338
    %v340 = vand.u32 %v235, 4294901760
    %341 = vmatprep.subr.mxu0 %v340
    %v342 = vand.u32 %v234, 4294901760
    %343 = vmatpush1.xpose.msra.mxu0 %v342
    %v344 = vand.u32 %v237, 4294901760
    %345 = vmatprep.subr.mxu0 %v344
    %v346 = vand.u32 %v236, 4294901760
    %347 = vmatpush1.xpose.msra.mxu0 %v346
    %v348 = vand.u32 %v239, 4294901760
    %349 = vmatprep.subr.mxu0 %v348
    %v350 = vand.u32 %v238, 4294901760
    %351 = vmatpush1.xpose.msra.mxu0 %v350
    %v352 = vand.u32 %v241, 4294901760
    %353 = vmatprep.subr.mxu0 %v352
    %v354 = vand.u32 %v240, 4294901760
    %355 = vmatpush1.xpose.msra.mxu0 %v354
    %v356 = vand.u32 %v243, 4294901760
    %357 = vmatprep.subr.mxu0 %v356
    %v358 = vand.u32 %v242, 4294901760
    %359 = vmatpush1.xpose.msra.mxu0 %v358
    %v360 = vand.u32 %v245, 4294901760
    %361 = vmatprep.subr.mxu0 %v360
    %v362 = vand.u32 %v244, 4294901760
    %363 = vmatpush1.xpose.msra.mxu0 %v362
    %v364 = vand.u32 %v247, 4294901760
    %365 = vmatprep.subr.mxu0 %v364
    %v366 = vand.u32 %v246, 4294901760
    %367 = vmatpush1.xpose.msra.mxu0 %v366
    %v368 = vand.u32 %v249, 4294901760
    %369 = vmatprep.subr.mxu0 %v368
    %v370 = vand.u32 %v248, 4294901760
    %371 = vmatpush1.xpose.msra.mxu0 %v370
    %v372 = vand.u32 %v251, 4294901760
    %373 = vmatprep.subr.mxu0 %v372
    %v374 = vand.u32 %v250, 4294901760
    %375 = vmatpush1.xpose.msra.mxu0 %v374
    %v376 = vand.u32 %v253, 4294901760
    %377 = vmatprep.subr.mxu0 %v376
    %v378 = vand.u32 %v252, 4294901760
    %379 = vmatpush1.xpose.msra.mxu0 %v378
    %v380 = vand.u32 %v255, 4294901760
    %381 = vmatprep.subr.mxu0 %v380
    %v382 = vand.u32 %v254, 4294901760
    %383 = vmatpush1.xpose.msra.mxu0 %v382
    %v384 = vand.u32 %v51, 4294901760
    %v385 = vsub.f32 %v51, %v384
    %v386 = vand.u32 %v385, 4294901760
    %v387 = vsub.f32 %v385, %v386
    %v388 = vand.u32 %v387, 4294901760
    %389 = vmatprep.mubr.f32.mxu0 %v388
    %v390 = vand.u32 %v50, 4294901760
    %v391 = vsub.f32 %v50, %v390
    %v392 = vand.u32 %v391, 4294901760
    %v393 = vsub.f32 %v391, %v392
    %v394 = vand.u32 %v393, 4294901760
    %395 = vmatmul.mubr.f32.gmra.mrb[0].mxu0 %v394
    %v396 = vpop.f32.mrb[0].mxu0
    %v397 = vadd.f32 0.0, %v396
    %v398 = vpop.f32.mrb[0].mxu0
    %v399 = vadd.f32 0.0, %v398
    %v400 = vand.u32 %v53, 4294901760
    %v401 = vsub.f32 %v53, %v400
    %v402 = vand.u32 %v401, 4294901760
    %v403 = vsub.f32 %v401, %v402
    %v404 = vand.u32 %v403, 4294901760
    %405 = vmatprep.mubr.f32.mxu0 %v404
    %v406 = vand.u32 %v52, 4294901760
    %v407 = vsub.f32 %v52, %v406
    %v408 = vand.u32 %v407, 4294901760
    %v409 = vsub.f32 %v407, %v408
    %v410 = vand.u32 %v409, 4294901760
    %411 = vmatmul.mubr.f32.gmra.mrb[0].mxu0 %v410
    %v412 = vpop.f32.mrb[0].mxu0
    %v413 = vadd.f32 0.0, %v412
    %v414 = vpop.f32.mrb[0].mxu0
    %v415 = vadd.f32 0.0, %v414
    %v416 = vand.u32 %v55, 4294901760
    %v417 = vsub.f32 %v55, %v416
    %v418 = vand.u32 %v417, 4294901760
    %v419 = vsub.f32 %v417, %v418
    %v420 = vand.u32 %v419, 4294901760
    %421 = vmatprep.mubr.f32.mxu0 %v420
    %v422 = vand.u32 %v54, 4294901760
    %v423 = vsub.f32 %v54, %v422
    %v424 = vand.u32 %v423, 4294901760
    %v425 = vsub.f32 %v423, %v424
    %v426 = vand.u32 %v425, 4294901760
    %427 = vmatmul.mubr.f32.gmra.mrb[0].mxu0 %v426
    %v428 = vpop.f32.mrb[0].mxu0
    %v429 = vadd.f32 0.0, %v428
    %v430 = vpop.f32.mrb[0].mxu0
    %v431 = vadd.f32 0.0, %v430
    %v432 = vand.u32 %v57, 4294901760
    %v433 = vsub.f32 %v57, %v432
    %v434 = vand.u32 %v433, 4294901760
    %v435 = vsub.f32 %v433, %v434
    %v436 = vand.u32 %v435, 4294901760
    %437 = vmatprep.mubr.f32.mxu0 %v436
    %v438 = vand.u32 %v56, 4294901760
    %v439 = vsub.f32 %v56, %v438
    %v440 = vand.u32 %v439, 4294901760
    %v441 = vsub.f32 %v439, %v440
    %v442 = vand.u32 %v441, 4294901760
    %443 = vmatmul.mubr.f32.gmra.mrb[0].mxu0 %v442
    %v444 = vpop.f32.mrb[0].mxu0
    %v445 = vadd.f32 0.0, %v444
    %v446 = vpop.f32.mrb[0].mxu0
    %v447 = vadd.f32 0.0, %v446
    %448 = vdwg.mxu0
    %v449 = vand.u32 %v193, 4294901760
    %v450 = vsub.f32 %v193, %v449
    %v451 = vand.u32 %v450, 4294901760
    %v452 = vsub.f32 %v450, %v451
    %v453 = vand.u32 %v452, 4294901760
    %454 = vmatprep.subr.mxu0 %v453
    %v455 = vand.u32 %v192, 4294901760
    %v456 = vsub.f32 %v192, %v455
    %v457 = vand.u32 %v456, 4294901760
    %v458 = vsub.f32 %v456, %v457
    %v459 = vand.u32 %v458, 4294901760
    %460 = vmatpush1.xpose.msra.mxu0 %v459
    %v461 = vand.u32 %v195, 4294901760
    %v462 = vsub.f32 %v195, %v461
    %v463 = vand.u32 %v462, 4294901760
    %v464 = vsub.f32 %v462, %v463
    %v465 = vand.u32 %v464, 4294901760
    %466 = vmatprep.subr.mxu0 %v465
    %v467 = vand.u32 %v194, 4294901760
    %v468 = vsub.f32 %v194, %v467
    %v469 = vand.u32 %v468, 4294901760
    %v470 = vsub.f32 %v468, %v469
    %v471 = vand.u32 %v470, 4294901760
    %472 = vmatpush1.xpose.msra.mxu0 %v471
    %v473 = vand.u32 %v197, 4294901760
    %v474 = vsub.f32 %v197, %v473
    %v475 = vand.u32 %v474, 4294901760
    %v476 = vsub.f32 %v474, %v475
    %v477 = vand.u32 %v476, 4294901760
    %478 = vmatprep.subr.mxu0 %v477
    %v479 = vand.u32 %v196, 4294901760
    %v480 = vsub.f32 %v196, %v479
    %v481 = vand.u32 %v480, 4294901760
    %v482 = vsub.f32 %v480, %v481
    %v483 = vand.u32 %v482, 4294901760
    %484 = vmatpush1.xpose.msra.mxu0 %v483
    %v485 = vand.u32 %v199, 4294901760
    %v486 = vsub.f32 %v199, %v485
    %v487 = vand.u32 %v486, 4294901760
    %v488 = vsub.f32 %v486, %v487
    %v489 = vand.u32 %v488, 4294901760
    %490 = vmatprep.subr.mxu0 %v489
    %v491 = vand.u32 %v198, 4294901760
    %v492 = vsub.f32 %v198, %v491
    %v493 = vand.u32 %v492, 4294901760
    %v494 = vsub.f32 %v492, %v493
    %v495 = vand.u32 %v494, 4294901760
    %496 = vmatpush1.xpose.msra.mxu0 %v495
    %v497 = vand.u32 %v201, 4294901760
    %v498 = vsub.f32 %v201, %v497
    %v499 = vand.u32 %v498, 4294901760
    %v500 = vsub.f32 %v498, %v499
    %v501 = vand.u32 %v500, 4294901760
    %502 = vmatprep.subr.mxu0 %v501
    %v503 = vand.u32 %v200, 4294901760
    %v504 = vsub.f32 %v200, %v503
    %v505 = vand.u32 %v504, 4294901760
    %v506 = vsub.f32 %v504, %v505
    %v507 = vand.u32 %v506, 4294901760
    %508 = vmatpush1.xpose.msra.mxu0 %v507
    %v509 = vand.u32 %v203, 4294901760
    %v510 = vsub.f32 %v203, %v509
    %v511 = vand.u32 %v510, 4294901760
    %v512 = vsub.f32 %v510, %v511
    %v513 = vand.u32 %v512, 4294901760
    %514 = vmatprep.subr.mxu0 %v513
    %v515 = vand.u32 %v202, 4294901760
    %v516 = vsub.f32 %v202, %v515
    %v517 = vand.u32 %v516, 4294901760
    %v518 = vsub.f32 %v516, %v517
    %v519 = vand.u32 %v518, 4294901760
    %520 = vmatpush1.xpose.msra.mxu0 %v519
    %v521 = vand.u32 %v205, 4294901760
    %v522 = vsub.f32 %v205, %v521
    %v523 = vand.u32 %v522, 4294901760
    %v524 = vsub.f32 %v522, %v523
    %v525 = vand.u32 %v524, 4294901760
    %526 = vmatprep.subr.mxu0 %v525
    %v527 = vand.u32 %v204, 4294901760
    %v528 = vsub.f32 %v204, %v527
    %v529 = vand.u32 %v528, 4294901760
    %v530 = vsub.f32 %v528, %v529
    %v531 = vand.u32 %v530, 4294901760
    %532 = vmatpush1.xpose.msra.mxu0 %v531
    %v533 = vand.u32 %v207, 4294901760
    %v534 = vsub.f32 %v207, %v533
    %v535 = vand.u32 %v534, 4294901760
    %v536 = vsub.f32 %v534, %v535
    %v537 = vand.u32 %v536, 4294901760
    %538 = vmatprep.subr.mxu0 %v537
    %v539 = vand.u32 %v206, 4294901760
    %v540 = vsub.f32 %v206, %v539
    %v541 = vand.u32 %v540, 4294901760
    %v542 = vsub.f32 %v540, %v541
    %v543 = vand.u32 %v542, 4294901760
    %544 = vmatpush1.xpose.msra.mxu0 %v543
    %v545 = vand.u32 %v209, 4294901760
    %v546 = vsub.f32 %v209, %v545
    %v547 = vand.u32 %v546, 4294901760
    %v548 = vsub.f32 %v546, %v547
    %v549 = vand.u32 %v548, 4294901760
    %550 = vmatprep.subr.mxu0 %v549
    %v551 = vand.u32 %v208, 4294901760
    %v552 = vsub.f32 %v208, %v551
    %v553 = vand.u32 %v552, 4294901760
    %v554 = vsub.f32 %v552, %v553
    %v555 = vand.u32 %v554, 4294901760
    %556 = vmatpush1.xpose.msra.mxu0 %v555
    %v557 = vand.u32 %v211, 4294901760
    %v558 = vsub.f32 %v211, %v557
    %v559 = vand.u32 %v558, 4294901760
    %v560 = vsub.f32 %v558, %v559
    %v561 = vand.u32 %v560, 4294901760
    %562 = vmatprep.subr.mxu0 %v561
    %v563 = vand.u32 %v210, 4294901760
    %v564 = vsub.f32 %v210, %v563
    %v565 = vand.u32 %v564, 4294901760
    %v566 = vsub.f32 %v564, %v565
    %v567 = vand.u32 %v566, 4294901760
    %568 = vmatpush1.xpose.msra.mxu0 %v567
    %v569 = vand.u32 %v213, 4294901760
    %v570 = vsub.f32 %v213, %v569
    %v571 = vand.u32 %v570, 4294901760
    %v572 = vsub.f32 %v570, %v571
    %v573 = vand.u32 %v572, 4294901760
    %574 = vmatprep.subr.mxu0 %v573
    %v575 = vand.u32 %v212, 4294901760
    %v576 = vsub.f32 %v212, %v575
    %v577 = vand.u32 %v576, 4294901760
    %v578 = vsub.f32 %v576, %v577
    %v579 = vand.u32 %v578, 4294901760
    %580 = vmatpush1.xpose.msra.mxu0 %v579
    %v581 = vand.u32 %v215, 4294901760
    %v582 = vsub.f32 %v215, %v581
    %v583 = vand.u32 %v582, 4294901760
    %v584 = vsub.f32 %v582, %v583
    %v585 = vand.u32 %v584, 4294901760
    %586 = vmatprep.subr.mxu0 %v585
    %v587 = vand.u32 %v214, 4294901760
    %v588 = vsub.f32 %v214, %v587
    %v589 = vand.u32 %v588, 4294901760
    %v590 = vsub.f32 %v588, %v589
    %v591 = vand.u32 %v590, 4294901760
    %592 = vmatpush1.xpose.msra.mxu0 %v591
    %v593 = vand.u32 %v217, 4294901760
    %v594 = vsub.f32 %v217, %v593
    %v595 = vand.u32 %v594, 4294901760
    %v596 = vsub.f32 %v594, %v595
    %v597 = vand.u32 %v596, 4294901760
    %598 = vmatprep.subr.mxu0 %v597
    %v599 = vand.u32 %v216, 4294901760
    %v600 = vsub.f32 %v216, %v599
    %v601 = vand.u32 %v600, 4294901760
    %v602 = vsub.f32 %v600, %v601
    %v603 = vand.u32 %v602, 4294901760
    %604 = vmatpush1.xpose.msra.mxu0 %v603
    %v605 = vand.u32 %v219, 4294901760
    %v606 = vsub.f32 %v219, %v605
    %v607 = vand.u32 %v606, 4294901760
    %v608 = vsub.f32 %v606, %v607
    %v609 = vand.u32 %v608, 4294901760
    %610 = vmatprep.subr.mxu0 %v609
    %v611 = vand.u32 %v218, 4294901760
    %v612 = vsub.f32 %v218, %v611
    %v613 = vand.u32 %v612, 4294901760
    %v614 = vsub.f32 %v612, %v613
    %v615 = vand.u32 %v614, 4294901760
    %616 = vmatpush1.xpose.msra.mxu0 %v615
    %v617 = vand.u32 %v221, 4294901760
    %v618 = vsub.f32 %v221, %v617
    %v619 = vand.u32 %v618, 4294901760
    %v620 = vsub.f32 %v618, %v619
    %v621 = vand.u32 %v620, 4294901760
    %622 = vmatprep.subr.mxu0 %v621
    %v623 = vand.u32 %v220, 4294901760
    %v624 = vsub.f32 %v220, %v623
    %v625 = vand.u32 %v624, 4294901760
    %v626 = vsub.f32 %v624, %v625
    %v627 = vand.u32 %v626, 4294901760
    %628 = vmatpush1.xpose.msra.mxu0 %v627
    %v629 = vand.u32 %v223, 4294901760
    %v630 = vsub.f32 %v223, %v629
    %v631 = vand.u32 %v630, 4294901760
    %v632 = vsub.f32 %v630, %v631
    %v633 = vand.u32 %v632, 4294901760
    %634 = vmatprep.subr.mxu0 %v633
    %v635 = vand.u32 %v222, 4294901760
    %v636 = vsub.f32 %v222, %v635
    %v637 = vand.u32 %v636, 4294901760
    %v638 = vsub.f32 %v636, %v637
    %v639 = vand.u32 %v638, 4294901760
    %640 = vmatpush1.xpose.msra.mxu0 %v639
    %v641 = vand.u32 %v225, 4294901760
    %v642 = vsub.f32 %v225, %v641
    %v643 = vand.u32 %v642, 4294901760
    %v644 = vsub.f32 %v642, %v643
    %v645 = vand.u32 %v644, 4294901760
    %646 = vmatprep.subr.mxu0 %v645
    %v647 = vand.u32 %v224, 4294901760
    %v648 = vsub.f32 %v224, %v647
    %v649 = vand.u32 %v648, 4294901760
    %v650 = vsub.f32 %v648, %v649
    %v651 = vand.u32 %v650, 4294901760
    %652 = vmatpush1.xpose.msra.mxu0 %v651
    %v653 = vand.u32 %v227, 4294901760
    %v654 = vsub.f32 %v227, %v653
    %v655 = vand.u32 %v654, 4294901760
    %v656 = vsub.f32 %v654, %v655
    %v657 = vand.u32 %v656, 4294901760
    %658 = vmatprep.subr.mxu0 %v657
    %v659 = vand.u32 %v226, 4294901760
    %v660 = vsub.f32 %v226, %v659
    %v661 = vand.u32 %v660, 4294901760
    %v662 = vsub.f32 %v660, %v661
    %v663 = vand.u32 %v662, 4294901760
    %664 = vmatpush1.xpose.msra.mxu0 %v663
    %v665 = vand.u32 %v229, 4294901760
    %v666 = vsub.f32 %v229, %v665
    %v667 = vand.u32 %v666, 4294901760
    %v668 = vsub.f32 %v666, %v667
    %v669 = vand.u32 %v668, 4294901760
    %670 = vmatprep.subr.mxu0 %v669
    %v671 = vand.u32 %v228, 4294901760
    %v672 = vsub.f32 %v228, %v671
    %v673 = vand.u32 %v672, 4294901760
    %v674 = vsub.f32 %v672, %v673
    %v675 = vand.u32 %v674, 4294901760
    %676 = vmatpush1.xpose.msra.mxu0 %v675
    %v677 = vand.u32 %v231, 4294901760
    %v678 = vsub.f32 %v231, %v677
    %v679 = vand.u32 %v678, 4294901760
    %v680 = vsub.f32 %v678, %v679
    %v681 = vand.u32 %v680, 4294901760
    %682 = vmatprep.subr.mxu0 %v681
    %v683 = vand.u32 %v230, 4294901760
    %v684 = vsub.f32 %v230, %v683
    %v685 = vand.u32 %v684, 4294901760
    %v686 = vsub.f32 %v684, %v685
    %v687 = vand.u32 %v686, 4294901760
    %688 = vmatpush1.xpose.msra.mxu0 %v687
    %v689 = vand.u32 %v233, 4294901760
    %v690 = vsub.f32 %v233, %v689
    %v691 = vand.u32 %v690, 4294901760
    %v692 = vsub.f32 %v690, %v691
    %v693 = vand.u32 %v692, 4294901760
    %694 = vmatprep.subr.mxu0 %v693
    %v695 = vand.u32 %v232, 4294901760
    %v696 = vsub.f32 %v232, %v695
    %v697 = vand.u32 %v696, 4294901760
    %v698 = vsub.f32 %v696, %v697
    %v699 = vand.u32 %v698, 4294901760
    %700 = vmatpush1.xpose.msra.mxu0 %v699
    %v701 = vand.u32 %v235, 4294901760
    %v702 = vsub.f32 %v235, %v701
    %v703 = vand.u32 %v702, 4294901760
    %v704 = vsub.f32 %v702, %v703
    %v705 = vand.u32 %v704, 4294901760
    %706 = vmatprep.subr.mxu0 %v705
    %v707 = vand.u32 %v234, 4294901760
    %v708 = vsub.f32 %v234, %v707
    %v709 = vand.u32 %v708, 4294901760
    %v710 = vsub.f32 %v708, %v709
    %v711 = vand.u32 %v710, 4294901760
    %712 = vmatpush1.xpose.msra.mxu0 %v711
    %v713 = vand.u32 %v237, 4294901760
    %v714 = vsub.f32 %v237, %v713
    %v715 = vand.u32 %v714, 4294901760
    %v716 = vsub.f32 %v714, %v715
    %v717 = vand.u32 %v716, 4294901760
    %718 = vmatprep.subr.mxu0 %v717
    %v719 = vand.u32 %v236, 4294901760
    %v720 = vsub.f32 %v236, %v719
    %v721 = vand.u32 %v720, 4294901760
    %v722 = vsub.f32 %v720, %v721
    %v723 = vand.u32 %v722, 4294901760
    %724 = vmatpush1.xpose.msra.mxu0 %v723
    %v725 = vand.u32 %v239, 4294901760
    %v726 = vsub.f32 %v239, %v725
    %v727 = vand.u32 %v726, 4294901760
    %v728 = vsub.f32 %v726, %v727
    %v729 = vand.u32 %v728, 4294901760
    %730 = vmatprep.subr.mxu0 %v729
    %v731 = vand.u32 %v238, 4294901760
    %v732 = vsub.f32 %v238, %v731
    %v733 = vand.u32 %v732, 4294901760
    %v734 = vsub.f32 %v732, %v733
    %v735 = vand.u32 %v734, 4294901760
    %736 = vmatpush1.xpose.msra.mxu0 %v735
    %v737 = vand.u32 %v241, 4294901760
    %v738 = vsub.f32 %v241, %v737
    %v739 = vand.u32 %v738, 4294901760
    %v740 = vsub.f32 %v738, %v739
    %v741 = vand.u32 %v740, 4294901760
    %742 = vmatprep.subr.mxu0 %v741
    %v743 = vand.u32 %v240, 4294901760
    %v744 = vsub.f32 %v240, %v743
    %v745 = vand.u32 %v744, 4294901760
    %v746 = vsub.f32 %v744, %v745
    %v747 = vand.u32 %v746, 4294901760
    %748 = vmatpush1.xpose.msra.mxu0 %v747
    %v749 = vand.u32 %v243, 4294901760
    %v750 = vsub.f32 %v243, %v749
    %v751 = vand.u32 %v750, 4294901760
    %v752 = vsub.f32 %v750, %v751
    %v753 = vand.u32 %v752, 4294901760
    %754 = vmatprep.subr.mxu0 %v753
    %v755 = vand.u32 %v242, 4294901760
    %v756 = vsub.f32 %v242, %v755
    %v757 = vand.u32 %v756, 4294901760
    %v758 = vsub.f32 %v756, %v757
    %v759 = vand.u32 %v758, 4294901760
    %760 = vmatpush1.xpose.msra.mxu0 %v759
    %v761 = vand.u32 %v245, 4294901760
    %v762 = vsub.f32 %v245, %v761
    %v763 = vand.u32 %v762, 4294901760
    %v764 = vsub.f32 %v762, %v763
    %v765 = vand.u32 %v764, 4294901760
    %766 = vmatprep.subr.mxu0 %v765
    %v767 = vand.u32 %v244, 4294901760
    %v768 = vsub.f32 %v244, %v767
    %v769 = vand.u32 %v768, 4294901760
    %v770 = vsub.f32 %v768, %v769
    %v771 = vand.u32 %v770, 4294901760
    %772 = vmatpush1.xpose.msra.mxu0 %v771
    %v773 = vand.u32 %v247, 4294901760
    %v774 = vsub.f32 %v247, %v773
    %v775 = vand.u32 %v774, 4294901760
    %v776 = vsub.f32 %v774, %v775
    %v777 = vand.u32 %v776, 4294901760
    %778 = vmatprep.subr.mxu0 %v777
    %v779 = vand.u32 %v246, 4294901760
    %v780 = vsub.f32 %v246, %v779
    %v781 = vand.u32 %v780, 4294901760
    %v782 = vsub.f32 %v780, %v781
    %v783 = vand.u32 %v782, 4294901760
    %784 = vmatpush1.xpose.msra.mxu0 %v783
    %v785 = vand.u32 %v249, 4294901760
    %v786 = vsub.f32 %v249, %v785
    %v787 = vand.u32 %v786, 4294901760
    %v788 = vsub.f32 %v786, %v787
    %v789 = vand.u32 %v788, 4294901760
    %790 = vmatprep.subr.mxu0 %v789
    %v791 = vand.u32 %v248, 4294901760
    %v792 = vsub.f32 %v248, %v791
    %v793 = vand.u32 %v792, 4294901760
    %v794 = vsub.f32 %v792, %v793
    %v795 = vand.u32 %v794, 4294901760
    %796 = vmatpush1.xpose.msra.mxu0 %v795
    %v797 = vand.u32 %v251, 4294901760
    %v798 = vsub.f32 %v251, %v797
    %v799 = vand.u32 %v798, 4294901760
    %v800 = vsub.f32 %v798, %v799
    %v801 = vand.u32 %v800, 4294901760
    %802 = vmatprep.subr.mxu0 %v801
    %v803 = vand.u32 %v250, 4294901760
    %v804 = vsub.f32 %v250, %v803
    %v805 = vand.u32 %v804, 4294901760
    %v806 = vsub.f32 %v804, %v805
    %v807 = vand.u32 %v806, 4294901760
    %808 = vmatpush1.xpose.msra.mxu0 %v807
    %v809 = vand.u32 %v253, 4294901760
    %v810 = vsub.f32 %v253, %v809
    %v811 = vand.u32 %v810, 4294901760
    %v812 = vsub.f32 %v810, %v811
    %v813 = vand.u32 %v812, 4294901760
    %814 = vmatprep.subr.mxu0 %v813
    %v815 = vand.u32 %v252, 4294901760
    %v816 = vsub.f32 %v252, %v815
    %v817 = vand.u32 %v816, 4294901760
    %v818 = vsub.f32 %v816, %v817
    %v819 = vand.u32 %v818, 4294901760
    %820 = vmatpush1.xpose.msra.mxu0 %v819
    %v821 = vand.u32 %v255, 4294901760
    %v822 = vsub.f32 %v255, %v821
    %v823 = vand.u32 %v822, 4294901760
    %v824 = vsub.f32 %v822, %v823
    %v825 = vand.u32 %v824, 4294901760
    %826 = vmatprep.subr.mxu0 %v825
    %v827 = vand.u32 %v254, 4294901760
    %v828 = vsub.f32 %v254, %v827
    %v829 = vand.u32 %v828, 4294901760
    %v830 = vsub.f32 %v828, %v829
    %v831 = vand.u32 %v830, 4294901760
    %832 = vmatpush1.xpose.msra.mxu0 %v831
    %v833 = vand.u32 %v51, 4294901760
    %834 = vmatprep.mubr.f32.mxu0 %v833
    %v835 = vand.u32 %v50, 4294901760
    %836 = vmatmul.mubr.f32.gmra.mrb[0].mxu0 %v835
    %v837 = vpop.f32.mrb[0].mxu0
    %v838 = vadd.f32 %v397, %v837
    %v839 = vpop.f32.mrb[0].mxu0
    %v840 = vadd.f32 %v399, %v839
    %v841 = vand.u32 %v53, 4294901760
    %842 = vmatprep.mubr.f32.mxu0 %v841
    %v843 = vand.u32 %v52, 4294901760
    %844 = vmatmul.mubr.f32.gmra.mrb[0].mxu0 %v843
    %v845 = vpop.f32.mrb[0].mxu0
    %v846 = vadd.f32 %v413, %v845
    %v847 = vpop.f32.mrb[0].mxu0
    %v848 = vadd.f32 %v415, %v847
    %v849 = vand.u32 %v55, 4294901760
    %850 = vmatprep.mubr.f32.mxu0 %v849
    %v851 = vand.u32 %v54, 4294901760
    %852 = vmatmul.mubr.f32.gmra.mrb[0].mxu0 %v851
    %v853 = vpop.f32.mrb[0].mxu0
    %v854 = vadd.f32 %v429, %v853
    %v855 = vpop.f32.mrb[0].mxu0
    %v856 = vadd.f32 %v431, %v855
    %v857 = vand.u32 %v57, 4294901760
    %858 = vmatprep.mubr.f32.mxu0 %v857
    %v859 = vand.u32 %v56, 4294901760
    %860 = vmatmul.mubr.f32.gmra.mrb[0].mxu0 %v859
    %v861 = vpop.f32.mrb[0].mxu0
    %v862 = vadd.f32 %v445, %v861
    %v863 = vpop.f32.mrb[0].mxu0
    %v864 = vadd.f32 %v447, %v863
    %865 = vdwg.mxu0
    %v866 = vand.u32 %v193, 4294901760
    %v867 = vsub.f32 %v193, %v866
    %868 = vmatprep.subr.mxu0 %v867
    %v869 = vand.u32 %v192, 4294901760
    %v870 = vsub.f32 %v192, %v869
    %871 = vmatpush1.xpose.msra.mxu0 %v870
    %v872 = vand.u32 %v195, 4294901760
    %v873 = vsub.f32 %v195, %v872
    %874 = vmatprep.subr.mxu0 %v873
    %v875 = vand.u32 %v194, 4294901760
    %v876 = vsub.f32 %v194, %v875
    %877 = vmatpush1.xpose.msra.mxu0 %v876
    %v878 = vand.u32 %v197, 4294901760
    %v879 = vsub.f32 %v197, %v878
    %880 = vmatprep.subr.mxu0 %v879
    %v881 = vand.u32 %v196, 4294901760
    %v882 = vsub.f32 %v196, %v881
    %883 = vmatpush1.xpose.msra.mxu0 %v882
    %v884 = vand.u32 %v199, 4294901760
    %v885 = vsub.f32 %v199, %v884
    %886 = vmatprep.subr.mxu0 %v885
    %v887 = vand.u32 %v198, 4294901760
    %v888 = vsub.f32 %v198, %v887
    %889 = vmatpush1.xpose.msra.mxu0 %v888
    %v890 = vand.u32 %v201, 4294901760
    %v891 = vsub.f32 %v201, %v890
    %892 = vmatprep.subr.mxu0 %v891
    %v893 = vand.u32 %v200, 4294901760
    %v894 = vsub.f32 %v200, %v893
    %895 = vmatpush1.xpose.msra.mxu0 %v894
    %v896 = vand.u32 %v203, 4294901760
    %v897 = vsub.f32 %v203, %v896
    %898 = vmatprep.subr.mxu0 %v897
    %v899 = vand.u32 %v202, 4294901760
    %v900 = vsub.f32 %v202, %v899
    %901 = vmatpush1.xpose.msra.mxu0 %v900
    %v902 = vand.u32 %v205, 4294901760
    %v903 = vsub.f32 %v205, %v902
    %904 = vmatprep.subr.mxu0 %v903
    %v905 = vand.u32 %v204, 4294901760
    %v906 = vsub.f32 %v204, %v905
    %907 = vmatpush1.xpose.msra.mxu0 %v906
    %v908 = vand.u32 %v207, 4294901760
    %v909 = vsub.f32 %v207, %v908
    %910 = vmatprep.subr.mxu0 %v909
    %v911 = vand.u32 %v206, 4294901760
    %v912 = vsub.f32 %v206, %v911
    %913 = vmatpush1.xpose.msra.mxu0 %v912
    %v914 = vand.u32 %v209, 4294901760
    %v915 = vsub.f32 %v209, %v914
    %916 = vmatprep.subr.mxu0 %v915
    %v917 = vand.u32 %v208, 4294901760
    %v918 = vsub.f32 %v208, %v917
    %919 = vmatpush1.xpose.msra.mxu0 %v918
    %v920 = vand.u32 %v211, 4294901760
    %v921 = vsub.f32 %v211, %v920
    %922 = vmatprep.subr.mxu0 %v921
    %v923 = vand.u32 %v210, 4294901760
    %v924 = vsub.f32 %v210, %v923
    %925 = vmatpush1.xpose.msra.mxu0 %v924
    %v926 = vand.u32 %v213, 4294901760
    %v927 = vsub.f32 %v213, %v926
    %928 = vmatprep.subr.mxu0 %v927
    %v929 = vand.u32 %v212, 4294901760
    %v930 = vsub.f32 %v212, %v929
    %931 = vmatpush1.xpose.msra.mxu0 %v930
    %v932 = vand.u32 %v215, 4294901760
    %v933 = vsub.f32 %v215, %v932
    %934 = vmatprep.subr.mxu0 %v933
    %v935 = vand.u32 %v214, 4294901760
    %v936 = vsub.f32 %v214, %v935
    %937 = vmatpush1.xpose.msra.mxu0 %v936
    %v938 = vand.u32 %v217, 4294901760
    %v939 = vsub.f32 %v217, %v938
    %940 = vmatprep.subr.mxu0 %v939
    %v941 = vand.u32 %v216, 4294901760
    %v942 = vsub.f32 %v216, %v941
    %943 = vmatpush1.xpose.msra.mxu0 %v942
    %v944 = vand.u32 %v219, 4294901760
    %v945 = vsub.f32 %v219, %v944
    %946 = vmatprep.subr.mxu0 %v945
    %v947 = vand.u32 %v218, 4294901760
    %v948 = vsub.f32 %v218, %v947
    %949 = vmatpush1.xpose.msra.mxu0 %v948
    %v950 = vand.u32 %v221, 4294901760
    %v951 = vsub.f32 %v221, %v950
    %952 = vmatprep.subr.mxu0 %v951
    %v953 = vand.u32 %v220, 4294901760
    %v954 = vsub.f32 %v220, %v953
    %955 = vmatpush1.xpose.msra.mxu0 %v954
    %v956 = vand.u32 %v223, 4294901760
    %v957 = vsub.f32 %v223, %v956
    %958 = vmatprep.subr.mxu0 %v957
    %v959 = vand.u32 %v222, 4294901760
    %v960 = vsub.f32 %v222, %v959
    %961 = vmatpush1.xpose.msra.mxu0 %v960
    %v962 = vand.u32 %v225, 4294901760
    %v963 = vsub.f32 %v225, %v962
    %964 = vmatprep.subr.mxu0 %v963
    %v965 = vand.u32 %v224, 4294901760
    %v966 = vsub.f32 %v224, %v965
    %967 = vmatpush1.xpose.msra.mxu0 %v966
    %v968 = vand.u32 %v227, 4294901760
    %v969 = vsub.f32 %v227, %v968
    %970 = vmatprep.subr.mxu0 %v969
    %v971 = vand.u32 %v226, 4294901760
    %v972 = vsub.f32 %v226, %v971
    %973 = vmatpush1.xpose.msra.mxu0 %v972
    %v974 = vand.u32 %v229, 4294901760
    %v975 = vsub.f32 %v229, %v974
    %976 = vmatprep.subr.mxu0 %v975
    %v977 = vand.u32 %v228, 4294901760
    %v978 = vsub.f32 %v228, %v977
    %979 = vmatpush1.xpose.msra.mxu0 %v978
    %v980 = vand.u32 %v231, 4294901760
    %v981 = vsub.f32 %v231, %v980
    %982 = vmatprep.subr.mxu0 %v981
    %v983 = vand.u32 %v230, 4294901760
    %v984 = vsub.f32 %v230, %v983
    %985 = vmatpush1.xpose.msra.mxu0 %v984
    %v986 = vand.u32 %v233, 4294901760
    %v987 = vsub.f32 %v233, %v986
    %988 = vmatprep.subr.mxu0 %v987
    %v989 = vand.u32 %v232, 4294901760
    %v990 = vsub.f32 %v232, %v989
    %991 = vmatpush1.xpose.msra.mxu0 %v990
    %v992 = vand.u32 %v235, 4294901760
    %v993 = vsub.f32 %v235, %v992
    %994 = vmatprep.subr.mxu0 %v993
    %v995 = vand.u32 %v234, 4294901760
    %v996 = vsub.f32 %v234, %v995
    %997 = vmatpush1.xpose.msra.mxu0 %v996
    %v998 = vand.u32 %v237, 4294901760
    %v999 = vsub.f32 %v237, %v998
    %1000 = vmatprep.subr.mxu0 %v999
    %v1001 = vand.u32 %v236, 4294901760
    %v1002 = vsub.f32 %v236, %v1001
    %1003 = vmatpush1.xpose.msra.mxu0 %v1002
    %v1004 = vand.u32 %v239, 4294901760
    %v1005 = vsub.f32 %v239, %v1004
    %1006 = vmatprep.subr.mxu0 %v1005
    %v1007 = vand.u32 %v238, 4294901760
    %v1008 = vsub.f32 %v238, %v1007
    %1009 = vmatpush1.xpose.msra.mxu0 %v1008
    %v1010 = vand.u32 %v241, 4294901760
    %v1011 = vsub.f32 %v241, %v1010
    %1012 = vmatprep.subr.mxu0 %v1011
    %v1013 = vand.u32 %v240, 4294901760
    %v1014 = vsub.f32 %v240, %v1013
    %1015 = vmatpush1.xpose.msra.mxu0 %v1014
    %v1016 = vand.u32 %v243, 4294901760
    %v1017 = vsub.f32 %v243, %v1016
    %1018 = vmatprep.subr.mxu0 %v1017
    %v1019 = vand.u32 %v242, 4294901760
    %v1020 = vsub.f32 %v242, %v1019
    %1021 = vmatpush1.xpose.msra.mxu0 %v1020
    %v1022 = vand.u32 %v245, 4294901760
    %v1023 = vsub.f32 %v245, %v1022
    %1024 = vmatprep.subr.mxu0 %v1023
    %v1025 = vand.u32 %v244, 4294901760
    %v1026 = vsub.f32 %v244, %v1025
    %1027 = vmatpush1.xpose.msra.mxu0 %v1026
    %v1028 = vand.u32 %v247, 4294901760
    %v1029 = vsub.f32 %v247, %v1028
    %1030 = vmatprep.subr.mxu0 %v1029
    %v1031 = vand.u32 %v246, 4294901760
    %v1032 = vsub.f32 %v246, %v1031
    %1033 = vmatpush1.xpose.msra.mxu0 %v1032
    %v1034 = vand.u32 %v249, 4294901760
    %v1035 = vsub.f32 %v249, %v1034
    %1036 = vmatprep.subr.mxu0 %v1035
    %v1037 = vand.u32 %v248, 4294901760
    %v1038 = vsub.f32 %v248, %v1037
    %1039 = vmatpush1.xpose.msra.mxu0 %v1038
    %v1040 = vand.u32 %v251, 4294901760
    %v1041 = vsub.f32 %v251, %v1040
    %1042 = vmatprep.subr.mxu0 %v1041
    %v1043 = vand.u32 %v250, 4294901760
    %v1044 = vsub.f32 %v250, %v1043
    %1045 = vmatpush1.xpose.msra.mxu0 %v1044
    %v1046 = vand.u32 %v253, 4294901760
    %v1047 = vsub.f32 %v253, %v1046
    %1048 = vmatprep.subr.mxu0 %v1047
    %v1049 = vand.u32 %v252, 4294901760
    %v1050 = vsub.f32 %v252, %v1049
    %1051 = vmatpush1.xpose.msra.mxu0 %v1050
    %v1052 = vand.u32 %v255, 4294901760
    %v1053 = vsub.f32 %v255, %v1052
    %1054 = vmatprep.subr.mxu0 %v1053
    %v1055 = vand.u32 %v254, 4294901760
    %v1056 = vsub.f32 %v254, %v1055
    %1057 = vmatpush1.xpose.msra.mxu0 %v1056
    %v1058 = vand.u32 %v51, 4294901760
    %v1059 = vsub.f32 %v51, %v1058
    %1060 = vmatprep.mubr.f32.mxu0 %v1059
    %v1061 = vand.u32 %v50, 4294901760
    %v1062 = vsub.f32 %v50, %v1061
    %1063 = vmatmul.mubr.f32.gmra.mrb[0].mxu0 %v1062
    %v1064 = vpop.f32.mrb[0].mxu0
    %v1065 = vadd.f32 %v838, %v1064
    %v1066 = vpop.f32.mrb[0].mxu0
    %v1067 = vadd.f32 %v840, %v1066
    %v1068 = vand.u32 %v53, 4294901760
    %v1069 = vsub.f32 %v53, %v1068
    %1070 = vmatprep.mubr.f32.mxu0 %v1069
    %v1071 = vand.u32 %v52, 4294901760
    %v1072 = vsub.f32 %v52, %v1071
    %1073 = vmatmul.mubr.f32.gmra.mrb[0].mxu0 %v1072
    %v1074 = vpop.f32.mrb[0].mxu0
    %v1075 = vadd.f32 %v846, %v1074
    %v1076 = vpop.f32.mrb[0].mxu0
    %v1077 = vadd.f32 %v848, %v1076
    %v1078 = vand.u32 %v55, 4294901760
    %v1079 = vsub.f32 %v55, %v1078
    %1080 = vmatprep.mubr.f32.mxu0 %v1079
    %v1081 = vand.u32 %v54, 4294901760
    %v1082 = vsub.f32 %v54, %v1081
    %1083 = vmatmul.mubr.f32.gmra.mrb[0].mxu0 %v1082
    %v1084 = vpop.f32.mrb[0].mxu0
    %v1085 = vadd.f32 %v854, %v1084
    %v1086 = vpop.f32.mrb[0].mxu0
    %v1087 = vadd.f32 %v856, %v1086
    %v1088 = vand.u32 %v57, 4294901760
    %v1089 = vsub.f32 %v57, %v1088
    %1090 = vmatprep.mubr.f32.mxu0 %v1089
    %v1091 = vand.u32 %v56, 4294901760
    %v1092 = vsub.f32 %v56, %v1091
    %1093 = vmatmul.mubr.f32.gmra.mrb[0].mxu0 %v1092
    %v1094 = vpop.f32.mrb[0].mxu0
    %v1095 = vadd.f32 %v862, %v1094
    %v1096 = vpop.f32.mrb[0].mxu0
    %v1097 = vadd.f32 %v864, %v1096
    %1098 = vdwg.mxu0
    %v1099 = vand.u32 %v193, 4294901760
    %1100 = vmatprep.subr.mxu0 %v1099
    %v1101 = vand.u32 %v192, 4294901760
    %1102 = vmatpush1.xpose.msra.mxu0 %v1101
    %v1103 = vand.u32 %v195, 4294901760
    %1104 = vmatprep.subr.mxu0 %v1103
    %v1105 = vand.u32 %v194, 4294901760
    %1106 = vmatpush1.xpose.msra.mxu0 %v1105
    %v1107 = vand.u32 %v197, 4294901760
    %1108 = vmatprep.subr.mxu0 %v1107
    %v1109 = vand.u32 %v196, 4294901760
    %1110 = vmatpush1.xpose.msra.mxu0 %v1109
    %v1111 = vand.u32 %v199, 4294901760
    %1112 = vmatprep.subr.mxu0 %v1111
    %v1113 = vand.u32 %v198, 4294901760
    %1114 = vmatpush1.xpose.msra.mxu0 %v1113
    %v1115 = vand.u32 %v201, 4294901760
    %1116 = vmatprep.subr.mxu0 %v1115
    %v1117 = vand.u32 %v200, 4294901760
    %1118 = vmatpush1.xpose.msra.mxu0 %v1117
    %v1119 = vand.u32 %v203, 4294901760
    %1120 = vmatprep.subr.mxu0 %v1119
    %v1121 = vand.u32 %v202, 4294901760
    %1122 = vmatpush1.xpose.msra.mxu0 %v1121
    %v1123 = vand.u32 %v205, 4294901760
    %1124 = vmatprep.subr.mxu0 %v1123
    %v1125 = vand.u32 %v204, 4294901760
    %1126 = vmatpush1.xpose.msra.mxu0 %v1125
    %v1127 = vand.u32 %v207, 4294901760
    %1128 = vmatprep.subr.mxu0 %v1127
    %v1129 = vand.u32 %v206, 4294901760
    %1130 = vmatpush1.xpose.msra.mxu0 %v1129
    %v1131 = vand.u32 %v209, 4294901760
    %1132 = vmatprep.subr.mxu0 %v1131
    %v1133 = vand.u32 %v208, 4294901760
    %1134 = vmatpush1.xpose.msra.mxu0 %v1133
    %v1135 = vand.u32 %v211, 4294901760
    %1136 = vmatprep.subr.mxu0 %v1135
    %v1137 = vand.u32 %v210, 4294901760
    %1138 = vmatpush1.xpose.msra.mxu0 %v1137
    %v1139 = vand.u32 %v213, 4294901760
    %1140 = vmatprep.subr.mxu0 %v1139
    %v1141 = vand.u32 %v212, 4294901760
    %1142 = vmatpush1.xpose.msra.mxu0 %v1141
    %v1143 = vand.u32 %v215, 4294901760
    %1144 = vmatprep.subr.mxu0 %v1143
    %v1145 = vand.u32 %v214, 4294901760
    %1146 = vmatpush1.xpose.msra.mxu0 %v1145
    %v1147 = vand.u32 %v217, 4294901760
    %1148 = vmatprep.subr.mxu0 %v1147
    %v1149 = vand.u32 %v216, 4294901760
    %1150 = vmatpush1.xpose.msra.mxu0 %v1149
    %v1151 = vand.u32 %v219, 4294901760
    %1152 = vmatprep.subr.mxu0 %v1151
    %v1153 = vand.u32 %v218, 4294901760
    %1154 = vmatpush1.xpose.msra.mxu0 %v1153
    %v1155 = vand.u32 %v221, 4294901760
    %1156 = vmatprep.subr.mxu0 %v1155
    %v1157 = vand.u32 %v220, 4294901760
    %1158 = vmatpush1.xpose.msra.mxu0 %v1157
    %v1159 = vand.u32 %v223, 4294901760
    %1160 = vmatprep.subr.mxu0 %v1159
    %v1161 = vand.u32 %v222, 4294901760
    %1162 = vmatpush1.xpose.msra.mxu0 %v1161
    %v1163 = vand.u32 %v225, 4294901760
    %1164 = vmatprep.subr.mxu0 %v1163
    %v1165 = vand.u32 %v224, 4294901760
    %1166 = vmatpush1.xpose.msra.mxu0 %v1165
    %v1167 = vand.u32 %v227, 4294901760
    %1168 = vmatprep.subr.mxu0 %v1167
    %v1169 = vand.u32 %v226, 4294901760
    %1170 = vmatpush1.xpose.msra.mxu0 %v1169
    %v1171 = vand.u32 %v229, 4294901760
    %1172 = vmatprep.subr.mxu0 %v1171
    %v1173 = vand.u32 %v228, 4294901760
    %1174 = vmatpush1.xpose.msra.mxu0 %v1173
    %v1175 = vand.u32 %v231, 4294901760
    %1176 = vmatprep.subr.mxu0 %v1175
    %v1177 = vand.u32 %v230, 4294901760
    %1178 = vmatpush1.xpose.msra.mxu0 %v1177
    %v1179 = vand.u32 %v233, 4294901760
    %1180 = vmatprep.subr.mxu0 %v1179
    %v1181 = vand.u32 %v232, 4294901760
    %1182 = vmatpush1.xpose.msra.mxu0 %v1181
    %v1183 = vand.u32 %v235, 4294901760
    %1184 = vmatprep.subr.mxu0 %v1183
    %v1185 = vand.u32 %v234, 4294901760
    %1186 = vmatpush1.xpose.msra.mxu0 %v1185
    %v1187 = vand.u32 %v237, 4294901760
    %1188 = vmatprep.subr.mxu0 %v1187
    %v1189 = vand.u32 %v236, 4294901760
    %1190 = vmatpush1.xpose.msra.mxu0 %v1189
    %v1191 = vand.u32 %v239, 4294901760
    %1192 = vmatprep.subr.mxu0 %v1191
    %v1193 = vand.u32 %v238, 4294901760
    %1194 = vmatpush1.xpose.msra.mxu0 %v1193
    %v1195 = vand.u32 %v241, 4294901760
    %1196 = vmatprep.subr.mxu0 %v1195
    %v1197 = vand.u32 %v240, 4294901760
    %1198 = vmatpush1.xpose.msra.mxu0 %v1197
    %v1199 = vand.u32 %v243, 4294901760
    %1200 = vmatprep.subr.mxu0 %v1199
    %v1201 = vand.u32 %v242, 4294901760
    %1202 = vmatpush1.xpose.msra.mxu0 %v1201
    %v1203 = vand.u32 %v245, 4294901760
    %1204 = vmatprep.subr.mxu0 %v1203
    %v1205 = vand.u32 %v244, 4294901760
    %1206 = vmatpush1.xpose.msra.mxu0 %v1205
    %v1207 = vand.u32 %v247, 4294901760
    %1208 = vmatprep.subr.mxu0 %v1207
    %v1209 = vand.u32 %v246, 4294901760
    %1210 = vmatpush1.xpose.msra.mxu0 %v1209
    %v1211 = vand.u32 %v249, 4294901760
    %1212 = vmatprep.subr.mxu0 %v1211
    %v1213 = vand.u32 %v248, 4294901760
    %1214 = vmatpush1.xpose.msra.mxu0 %v1213
    %v1215 = vand.u32 %v251, 4294901760
    %1216 = vmatprep.subr.mxu0 %v1215
    %v1217 = vand.u32 %v250, 4294901760
    %1218 = vmatpush1.xpose.msra.mxu0 %v1217
    %v1219 = vand.u32 %v253, 4294901760
    %1220 = vmatprep.subr.mxu0 %v1219
    %v1221 = vand.u32 %v252, 4294901760
    %1222 = vmatpush1.xpose.msra.mxu0 %v1221
    %v1223 = vand.u32 %v255, 4294901760
    %1224 = vmatprep.subr.mxu0 %v1223
    %v1225 = vand.u32 %v254, 4294901760
    %1226 = vmatpush1.xpose.msra.mxu0 %v1225
    %v1227 = vand.u32 %v51, 4294901760
    %v1228 = vsub.f32 %v51, %v1227
    %v1229 = vand.u32 %v1228, 4294901760
    %1230 = vmatprep.mubr.f32.mxu0 %v1229
    %v1231 = vand.u32 %v50, 4294901760
    %v1232 = vsub.f32 %v50, %v1231
    %v1233 = vand.u32 %v1232, 4294901760
    %1234 = vmatmul.mubr.f32.gmra.mrb[0].mxu0 %v1233
    %v1235 = vpop.f32.mrb[0].mxu0
    %v1236 = vadd.f32 %v1065, %v1235
    %v1237 = vpop.f32.mrb[0].mxu0
    %v1238 = vadd.f32 %v1067, %v1237
    %v1239 = vand.u32 %v53, 4294901760
    %v1240 = vsub.f32 %v53, %v1239
    %v1241 = vand.u32 %v1240, 4294901760
    %1242 = vmatprep.mubr.f32.mxu0 %v1241
    %v1243 = vand.u32 %v52, 4294901760
    %v1244 = vsub.f32 %v52, %v1243
    %v1245 = vand.u32 %v1244, 4294901760
    %1246 = vmatmul.mubr.f32.gmra.mrb[0].mxu0 %v1245
    %v1247 = vpop.f32.mrb[0].mxu0
    %v1248 = vadd.f32 %v1075, %v1247
    %v1249 = vpop.f32.mrb[0].mxu0
    %v1250 = vadd.f32 %v1077, %v1249
    %v1251 = vand.u32 %v55, 4294901760
    %v1252 = vsub.f32 %v55, %v1251
    %v1253 = vand.u32 %v1252, 4294901760
    %1254 = vmatprep.mubr.f32.mxu0 %v1253
    %v1255 = vand.u32 %v54, 4294901760
    %v1256 = vsub.f32 %v54, %v1255
    %v1257 = vand.u32 %v1256, 4294901760
    %1258 = vmatmul.mubr.f32.gmra.mrb[0].mxu0 %v1257
    %v1259 = vpop.f32.mrb[0].mxu0
    %v1260 = vadd.f32 %v1085, %v1259
    %v1261 = vpop.f32.mrb[0].mxu0
    %v1262 = vadd.f32 %v1087, %v1261
    %v1263 = vand.u32 %v57, 4294901760
    %v1264 = vsub.f32 %v57, %v1263
    %v1265 = vand.u32 %v1264, 4294901760
    %1266 = vmatprep.mubr.f32.mxu0 %v1265
    %v1267 = vand.u32 %v56, 4294901760
    %v1268 = vsub.f32 %v56, %v1267
    %v1269 = vand.u32 %v1268, 4294901760
    %1270 = vmatmul.mubr.f32.gmra.mrb[0].mxu0 %v1269
    %v1271 = vpop.f32.mrb[0].mxu0
    %v1272 = vadd.f32 %v1095, %v1271
    %v1273 = vpop.f32.mrb[0].mxu0
    %v1274 = vadd.f32 %v1097, %v1273
    %1275 = vdwg.mxu0
    %v1276 = vand.u32 %v193, 4294901760
    %v1277 = vsub.f32 %v193, %v1276
    %v1278 = vand.u32 %v1277, 4294901760
    %1279 = vmatprep.subr.mxu0 %v1278
    %v1280 = vand.u32 %v192, 4294901760
    %v1281 = vsub.f32 %v192, %v1280
    %v1282 = vand.u32 %v1281, 4294901760
    %1283 = vmatpush1.xpose.msra.mxu0 %v1282
    %v1284 = vand.u32 %v195, 4294901760
    %v1285 = vsub.f32 %v195, %v1284
    %v1286 = vand.u32 %v1285, 4294901760
    %1287 = vmatprep.subr.mxu0 %v1286
    %v1288 = vand.u32 %v194, 4294901760
    %v1289 = vsub.f32 %v194, %v1288
    %v1290 = vand.u32 %v1289, 4294901760
    %1291 = vmatpush1.xpose.msra.mxu0 %v1290
    %v1292 = vand.u32 %v197, 4294901760
    %v1293 = vsub.f32 %v197, %v1292
    %v1294 = vand.u32 %v1293, 4294901760
    %1295 = vmatprep.subr.mxu0 %v1294
    %v1296 = vand.u32 %v196, 4294901760
    %v1297 = vsub.f32 %v196, %v1296
    %v1298 = vand.u32 %v1297, 4294901760
    %1299 = vmatpush1.xpose.msra.mxu0 %v1298
    %v1300 = vand.u32 %v199, 4294901760
    %v1301 = vsub.f32 %v199, %v1300
    %v1302 = vand.u32 %v1301, 4294901760
    %1303 = vmatprep.subr.mxu0 %v1302
    %v1304 = vand.u32 %v198, 4294901760
    %v1305 = vsub.f32 %v198, %v1304
    %v1306 = vand.u32 %v1305, 4294901760
    %1307 = vmatpush1.xpose.msra.mxu0 %v1306
    %v1308 = vand.u32 %v201, 4294901760
    %v1309 = vsub.f32 %v201, %v1308
    %v1310 = vand.u32 %v1309, 4294901760
    %1311 = vmatprep.subr.mxu0 %v1310
    %v1312 = vand.u32 %v200, 4294901760
    %v1313 = vsub.f32 %v200, %v1312
    %v1314 = vand.u32 %v1313, 4294901760
    %1315 = vmatpush1.xpose.msra.mxu0 %v1314
    %v1316 = vand.u32 %v203, 4294901760
    %v1317 = vsub.f32 %v203, %v1316
    %v1318 = vand.u32 %v1317, 4294901760
    %1319 = vmatprep.subr.mxu0 %v1318
    %v1320 = vand.u32 %v202, 4294901760
    %v1321 = vsub.f32 %v202, %v1320
    %v1322 = vand.u32 %v1321, 4294901760
    %1323 = vmatpush1.xpose.msra.mxu0 %v1322
    %v1324 = vand.u32 %v205, 4294901760
    %v1325 = vsub.f32 %v205, %v1324
    %v1326 = vand.u32 %v1325, 4294901760
    %1327 = vmatprep.subr.mxu0 %v1326
    %v1328 = vand.u32 %v204, 4294901760
    %v1329 = vsub.f32 %v204, %v1328
    %v1330 = vand.u32 %v1329, 4294901760
    %1331 = vmatpush1.xpose.msra.mxu0 %v1330
    %v1332 = vand.u32 %v207, 4294901760
    %v1333 = vsub.f32 %v207, %v1332
    %v1334 = vand.u32 %v1333, 4294901760
    %1335 = vmatprep.subr.mxu0 %v1334
    %v1336 = vand.u32 %v206, 4294901760
    %v1337 = vsub.f32 %v206, %v1336
    %v1338 = vand.u32 %v1337, 4294901760
    %1339 = vmatpush1.xpose.msra.mxu0 %v1338
    %v1340 = vand.u32 %v209, 4294901760
    %v1341 = vsub.f32 %v209, %v1340
    %v1342 = vand.u32 %v1341, 4294901760
    %1343 = vmatprep.subr.mxu0 %v1342
    %v1344 = vand.u32 %v208, 4294901760
    %v1345 = vsub.f32 %v208, %v1344
    %v1346 = vand.u32 %v1345, 4294901760
    %1347 = vmatpush1.xpose.msra.mxu0 %v1346
    %v1348 = vand.u32 %v211, 4294901760
    %v1349 = vsub.f32 %v211, %v1348
    %v1350 = vand.u32 %v1349, 4294901760
    %1351 = vmatprep.subr.mxu0 %v1350
    %v1352 = vand.u32 %v210, 4294901760
    %v1353 = vsub.f32 %v210, %v1352
    %v1354 = vand.u32 %v1353, 4294901760
    %1355 = vmatpush1.xpose.msra.mxu0 %v1354
    %v1356 = vand.u32 %v213, 4294901760
    %v1357 = vsub.f32 %v213, %v1356
    %v1358 = vand.u32 %v1357, 4294901760
    %1359 = vmatprep.subr.mxu0 %v1358
    %v1360 = vand.u32 %v212, 4294901760
    %v1361 = vsub.f32 %v212, %v1360
    %v1362 = vand.u32 %v1361, 4294901760
    %1363 = vmatpush1.xpose.msra.mxu0 %v1362
    %v1364 = vand.u32 %v215, 4294901760
    %v1365 = vsub.f32 %v215, %v1364
    %v1366 = vand.u32 %v1365, 4294901760
    %1367 = vmatprep.subr.mxu0 %v1366
    %v1368 = vand.u32 %v214, 4294901760
    %v1369 = vsub.f32 %v214, %v1368
    %v1370 = vand.u32 %v1369, 4294901760
    %1371 = vmatpush1.xpose.msra.mxu0 %v1370
    %v1372 = vand.u32 %v217, 4294901760
    %v1373 = vsub.f32 %v217, %v1372
    %v1374 = vand.u32 %v1373, 4294901760
    %1375 = vmatprep.subr.mxu0 %v1374
    %v1376 = vand.u32 %v216, 4294901760
    %v1377 = vsub.f32 %v216, %v1376
    %v1378 = vand.u32 %v1377, 4294901760
    %1379 = vmatpush1.xpose.msra.mxu0 %v1378
    %v1380 = vand.u32 %v219, 4294901760
    %v1381 = vsub.f32 %v219, %v1380
    %v1382 = vand.u32 %v1381, 4294901760
    %1383 = vmatprep.subr.mxu0 %v1382
    %v1384 = vand.u32 %v218, 4294901760
    %v1385 = vsub.f32 %v218, %v1384
    %v1386 = vand.u32 %v1385, 4294901760
    %1387 = vmatpush1.xpose.msra.mxu0 %v1386
    %v1388 = vand.u32 %v221, 4294901760
    %v1389 = vsub.f32 %v221, %v1388
    %v1390 = vand.u32 %v1389, 4294901760
    %1391 = vmatprep.subr.mxu0 %v1390
    %v1392 = vand.u32 %v220, 4294901760
    %v1393 = vsub.f32 %v220, %v1392
    %v1394 = vand.u32 %v1393, 4294901760
    %1395 = vmatpush1.xpose.msra.mxu0 %v1394
    %v1396 = vand.u32 %v223, 4294901760
    %v1397 = vsub.f32 %v223, %v1396
    %v1398 = vand.u32 %v1397, 4294901760
    %1399 = vmatprep.subr.mxu0 %v1398
    %v1400 = vand.u32 %v222, 4294901760
    %v1401 = vsub.f32 %v222, %v1400
    %v1402 = vand.u32 %v1401, 4294901760
    %1403 = vmatpush1.xpose.msra.mxu0 %v1402
    %v1404 = vand.u32 %v225, 4294901760
    %v1405 = vsub.f32 %v225, %v1404
    %v1406 = vand.u32 %v1405, 4294901760
    %1407 = vmatprep.subr.mxu0 %v1406
    %v1408 = vand.u32 %v224, 4294901760
    %v1409 = vsub.f32 %v224, %v1408
    %v1410 = vand.u32 %v1409, 4294901760
    %1411 = vmatpush1.xpose.msra.mxu0 %v1410
    %v1412 = vand.u32 %v227, 4294901760
    %v1413 = vsub.f32 %v227, %v1412
    %v1414 = vand.u32 %v1413, 4294901760
    %1415 = vmatprep.subr.mxu0 %v1414
    %v1416 = vand.u32 %v226, 4294901760
    %v1417 = vsub.f32 %v226, %v1416
    %v1418 = vand.u32 %v1417, 4294901760
    %1419 = vmatpush1.xpose.msra.mxu0 %v1418
    %v1420 = vand.u32 %v229, 4294901760
    %v1421 = vsub.f32 %v229, %v1420
    %v1422 = vand.u32 %v1421, 4294901760
    %1423 = vmatprep.subr.mxu0 %v1422
    %v1424 = vand.u32 %v228, 4294901760
    %v1425 = vsub.f32 %v228, %v1424
    %v1426 = vand.u32 %v1425, 4294901760
    %1427 = vmatpush1.xpose.msra.mxu0 %v1426
    %v1428 = vand.u32 %v231, 4294901760
    %v1429 = vsub.f32 %v231, %v1428
    %v1430 = vand.u32 %v1429, 4294901760
    %1431 = vmatprep.subr.mxu0 %v1430
    %v1432 = vand.u32 %v230, 4294901760
    %v1433 = vsub.f32 %v230, %v1432
    %v1434 = vand.u32 %v1433, 4294901760
    %1435 = vmatpush1.xpose.msra.mxu0 %v1434
    %v1436 = vand.u32 %v233, 4294901760
    %v1437 = vsub.f32 %v233, %v1436
    %v1438 = vand.u32 %v1437, 4294901760
    %1439 = vmatprep.subr.mxu0 %v1438
    %v1440 = vand.u32 %v232, 4294901760
    %v1441 = vsub.f32 %v232, %v1440
    %v1442 = vand.u32 %v1441, 4294901760
    %1443 = vmatpush1.xpose.msra.mxu0 %v1442
    %v1444 = vand.u32 %v235, 4294901760
    %v1445 = vsub.f32 %v235, %v1444
    %v1446 = vand.u32 %v1445, 4294901760
    %1447 = vmatprep.subr.mxu0 %v1446
    %v1448 = vand.u32 %v234, 4294901760
    %v1449 = vsub.f32 %v234, %v1448
    %v1450 = vand.u32 %v1449, 4294901760
    %1451 = vmatpush1.xpose.msra.mxu0 %v1450
    %v1452 = vand.u32 %v237, 4294901760
    %v1453 = vsub.f32 %v237, %v1452
    %v1454 = vand.u32 %v1453, 4294901760
    %1455 = vmatprep.subr.mxu0 %v1454
    %v1456 = vand.u32 %v236, 4294901760
    %v1457 = vsub.f32 %v236, %v1456
    %v1458 = vand.u32 %v1457, 4294901760
    %1459 = vmatpush1.xpose.msra.mxu0 %v1458
    %v1460 = vand.u32 %v239, 4294901760
    %v1461 = vsub.f32 %v239, %v1460
    %v1462 = vand.u32 %v1461, 4294901760
    %1463 = vmatprep.subr.mxu0 %v1462
    %v1464 = vand.u32 %v238, 4294901760
    %v1465 = vsub.f32 %v238, %v1464
    %v1466 = vand.u32 %v1465, 4294901760
    %1467 = vmatpush1.xpose.msra.mxu0 %v1466
    %v1468 = vand.u32 %v241, 4294901760
    %v1469 = vsub.f32 %v241, %v1468
    %v1470 = vand.u32 %v1469, 4294901760
    %1471 = vmatprep.subr.mxu0 %v1470
    %v1472 = vand.u32 %v240, 4294901760
    %v1473 = vsub.f32 %v240, %v1472
    %v1474 = vand.u32 %v1473, 4294901760
    %1475 = vmatpush1.xpose.msra.mxu0 %v1474
    %v1476 = vand.u32 %v243, 4294901760
    %v1477 = vsub.f32 %v243, %v1476
    %v1478 = vand.u32 %v1477, 4294901760
    %1479 = vmatprep.subr.mxu0 %v1478
    %v1480 = vand.u32 %v242, 4294901760
    %v1481 = vsub.f32 %v242, %v1480
    %v1482 = vand.u32 %v1481, 4294901760
    %1483 = vmatpush1.xpose.msra.mxu0 %v1482
    %v1484 = vand.u32 %v245, 4294901760
    %v1485 = vsub.f32 %v245, %v1484
    %v1486 = vand.u32 %v1485, 4294901760
    %1487 = vmatprep.subr.mxu0 %v1486
    %v1488 = vand.u32 %v244, 4294901760
    %v1489 = vsub.f32 %v244, %v1488
    %v1490 = vand.u32 %v1489, 4294901760
    %1491 = vmatpush1.xpose.msra.mxu0 %v1490
    %v1492 = vand.u32 %v247, 4294901760
    %v1493 = vsub.f32 %v247, %v1492
    %v1494 = vand.u32 %v1493, 4294901760
    %1495 = vmatprep.subr.mxu0 %v1494
    %v1496 = vand.u32 %v246, 4294901760
    %v1497 = vsub.f32 %v246, %v1496
    %v1498 = vand.u32 %v1497, 4294901760
    %1499 = vmatpush1.xpose.msra.mxu0 %v1498
    %v1500 = vand.u32 %v249, 4294901760
    %v1501 = vsub.f32 %v249, %v1500
    %v1502 = vand.u32 %v1501, 4294901760
    %1503 = vmatprep.subr.mxu0 %v1502
    %v1504 = vand.u32 %v248, 4294901760
    %v1505 = vsub.f32 %v248, %v1504
    %v1506 = vand.u32 %v1505, 4294901760
    %1507 = vmatpush1.xpose.msra.mxu0 %v1506
    %v1508 = vand.u32 %v251, 4294901760
    %v1509 = vsub.f32 %v251, %v1508
    %v1510 = vand.u32 %v1509, 4294901760
    %1511 = vmatprep.subr.mxu0 %v1510
    %v1512 = vand.u32 %v250, 4294901760
    %v1513 = vsub.f32 %v250, %v1512
    %v1514 = vand.u32 %v1513, 4294901760
    %1515 = vmatpush1.xpose.msra.mxu0 %v1514
    %v1516 = vand.u32 %v253, 4294901760
    %v1517 = vsub.f32 %v253, %v1516
    %v1518 = vand.u32 %v1517, 4294901760
    %1519 = vmatprep.subr.mxu0 %v1518
    %v1520 = vand.u32 %v252, 4294901760
    %v1521 = vsub.f32 %v252, %v1520
    %v1522 = vand.u32 %v1521, 4294901760
    %1523 = vmatpush1.xpose.msra.mxu0 %v1522
    %v1524 = vand.u32 %v255, 4294901760
    %v1525 = vsub.f32 %v255, %v1524
    %v1526 = vand.u32 %v1525, 4294901760
    %1527 = vmatprep.subr.mxu0 %v1526
    %v1528 = vand.u32 %v254, 4294901760
    %v1529 = vsub.f32 %v254, %v1528
    %v1530 = vand.u32 %v1529, 4294901760
    %1531 = vmatpush1.xpose.msra.mxu0 %v1530
    %v1532 = vand.u32 %v51, 4294901760
    %1533 = vmatprep.mubr.f32.mxu0 %v1532
    %v1534 = vand.u32 %v50, 4294901760
    %1535 = vmatmul.mubr.f32.gmra.mrb[0].mxu0 %v1534
    %v1536 = vpop.f32.mrb[0].mxu0
    %v1537 = vadd.f32 %v1236, %v1536
    %v1538 = vpop.f32.mrb[0].mxu0
    %v1539 = vadd.f32 %v1238, %v1538
    %v1540 = vand.u32 %v53, 4294901760
    %1541 = vmatprep.mubr.f32.mxu0 %v1540
    %v1542 = vand.u32 %v52, 4294901760
    %1543 = vmatmul.mubr.f32.gmra.mrb[0].mxu0 %v1542
    %v1544 = vpop.f32.mrb[0].mxu0
    %v1545 = vadd.f32 %v1248, %v1544
    %v1546 = vpop.f32.mrb[0].mxu0
    %v1547 = vadd.f32 %v1250, %v1546
    %v1548 = vand.u32 %v55, 4294901760
    %1549 = vmatprep.mubr.f32.mxu0 %v1548
    %v1550 = vand.u32 %v54, 4294901760
    %1551 = vmatmul.mubr.f32.gmra.mrb[0].mxu0 %v1550
    %v1552 = vpop.f32.mrb[0].mxu0
    %v1553 = vadd.f32 %v1260, %v1552
    %v1554 = vpop.f32.mrb[0].mxu0
    %v1555 = vadd.f32 %v1262, %v1554
    %v1556 = vand.u32 %v57, 4294901760
    %1557 = vmatprep.mubr.f32.mxu0 %v1556
    %v1558 = vand.u32 %v56, 4294901760
    %1559 = vmatmul.mubr.f32.gmra.mrb[0].mxu0 %v1558
    %v1560 = vpop.f32.mrb[0].mxu0
    %v1561 = vadd.f32 %v1272, %v1560
    %v1562 = vpop.f32.mrb[0].mxu0
    %v1563 = vadd.f32 %v1274, %v1562
    %1564 = vdwg.mxu0
    %v1565 = vand.u32 %v193, 4294901760
    %1566 = vmatprep.subr.mxu0 %v1565
    %v1567 = vand.u32 %v192, 4294901760
    %1568 = vmatpush1.xpose.msra.mxu0 %v1567
    %v1569 = vand.u32 %v195, 4294901760
    %1570 = vmatprep.subr.mxu0 %v1569
    %v1571 = vand.u32 %v194, 4294901760
    %1572 = vmatpush1.xpose.msra.mxu0 %v1571
    %v1573 = vand.u32 %v197, 4294901760
    %1574 = vmatprep.subr.mxu0 %v1573
    %v1575 = vand.u32 %v196, 4294901760
    %1576 = vmatpush1.xpose.msra.mxu0 %v1575
    %v1577 = vand.u32 %v199, 4294901760
    %1578 = vmatprep.subr.mxu0 %v1577
    %v1579 = vand.u32 %v198, 4294901760
    %1580 = vmatpush1.xpose.msra.mxu0 %v1579
    %v1581 = vand.u32 %v201, 4294901760
    %1582 = vmatprep.subr.mxu0 %v1581
    %v1583 = vand.u32 %v200, 4294901760
    %1584 = vmatpush1.xpose.msra.mxu0 %v1583
    %v1585 = vand.u32 %v203, 4294901760
    %1586 = vmatprep.subr.mxu0 %v1585
    %v1587 = vand.u32 %v202, 4294901760
    %1588 = vmatpush1.xpose.msra.mxu0 %v1587
    %v1589 = vand.u32 %v205, 4294901760
    %1590 = vmatprep.subr.mxu0 %v1589
    %v1591 = vand.u32 %v204, 4294901760
    %1592 = vmatpush1.xpose.msra.mxu0 %v1591
    %v1593 = vand.u32 %v207, 4294901760
    %1594 = vmatprep.subr.mxu0 %v1593
    %v1595 = vand.u32 %v206, 4294901760
    %1596 = vmatpush1.xpose.msra.mxu0 %v1595
    %v1597 = vand.u32 %v209, 4294901760
    %1598 = vmatprep.subr.mxu0 %v1597
    %v1599 = vand.u32 %v208, 4294901760
    %1600 = vmatpush1.xpose.msra.mxu0 %v1599
    %v1601 = vand.u32 %v211, 4294901760
    %1602 = vmatprep.subr.mxu0 %v1601
    %v1603 = vand.u32 %v210, 4294901760
    %1604 = vmatpush1.xpose.msra.mxu0 %v1603
    %v1605 = vand.u32 %v213, 4294901760
    %1606 = vmatprep.subr.mxu0 %v1605
    %v1607 = vand.u32 %v212, 4294901760
    %1608 = vmatpush1.xpose.msra.mxu0 %v1607
    %v1609 = vand.u32 %v215, 4294901760
    %1610 = vmatprep.subr.mxu0 %v1609
    %v1611 = vand.u32 %v214, 4294901760
    %1612 = vmatpush1.xpose.msra.mxu0 %v1611
    %v1613 = vand.u32 %v217, 4294901760
    %1614 = vmatprep.subr.mxu0 %v1613
    %v1615 = vand.u32 %v216, 4294901760
    %1616 = vmatpush1.xpose.msra.mxu0 %v1615
    %v1617 = vand.u32 %v219, 4294901760
    %1618 = vmatprep.subr.mxu0 %v1617
    %v1619 = vand.u32 %v218, 4294901760
    %1620 = vmatpush1.xpose.msra.mxu0 %v1619
    %v1621 = vand.u32 %v221, 4294901760
    %1622 = vmatprep.subr.mxu0 %v1621
    %v1623 = vand.u32 %v220, 4294901760
    %1624 = vmatpush1.xpose.msra.mxu0 %v1623
    %v1625 = vand.u32 %v223, 4294901760
    %1626 = vmatprep.subr.mxu0 %v1625
    %v1627 = vand.u32 %v222, 4294901760
    %1628 = vmatpush1.xpose.msra.mxu0 %v1627
    %v1629 = vand.u32 %v225, 4294901760
    %1630 = vmatprep.subr.mxu0 %v1629
    %v1631 = vand.u32 %v224, 4294901760
    %1632 = vmatpush1.xpose.msra.mxu0 %v1631
    %v1633 = vand.u32 %v227, 4294901760
    %1634 = vmatprep.subr.mxu0 %v1633
    %v1635 = vand.u32 %v226, 4294901760
    %1636 = vmatpush1.xpose.msra.mxu0 %v1635
    %v1637 = vand.u32 %v229, 4294901760
    %1638 = vmatprep.subr.mxu0 %v1637
    %v1639 = vand.u32 %v228, 4294901760
    %1640 = vmatpush1.xpose.msra.mxu0 %v1639
    %v1641 = vand.u32 %v231, 4294901760
    %1642 = vmatprep.subr.mxu0 %v1641
    %v1643 = vand.u32 %v230, 4294901760
    %1644 = vmatpush1.xpose.msra.mxu0 %v1643
    %v1645 = vand.u32 %v233, 4294901760
    %1646 = vmatprep.subr.mxu0 %v1645
    %v1647 = vand.u32 %v232, 4294901760
    %1648 = vmatpush1.xpose.msra.mxu0 %v1647
    %v1649 = vand.u32 %v235, 4294901760
    %1650 = vmatprep.subr.mxu0 %v1649
    %v1651 = vand.u32 %v234, 4294901760
    %1652 = vmatpush1.xpose.msra.mxu0 %v1651
    %v1653 = vand.u32 %v237, 4294901760
    %1654 = vmatprep.subr.mxu0 %v1653
    %v1655 = vand.u32 %v236, 4294901760
    %1656 = vmatpush1.xpose.msra.mxu0 %v1655
    %v1657 = vand.u32 %v239, 4294901760
    %1658 = vmatprep.subr.mxu0 %v1657
    %v1659 = vand.u32 %v238, 4294901760
    %1660 = vmatpush1.xpose.msra.mxu0 %v1659
    %v1661 = vand.u32 %v241, 4294901760
    %1662 = vmatprep.subr.mxu0 %v1661
    %v1663 = vand.u32 %v240, 4294901760
    %1664 = vmatpush1.xpose.msra.mxu0 %v1663
    %v1665 = vand.u32 %v243, 4294901760
    %1666 = vmatprep.subr.mxu0 %v1665
    %v1667 = vand.u32 %v242, 4294901760
    %1668 = vmatpush1.xpose.msra.mxu0 %v1667
    %v1669 = vand.u32 %v245, 4294901760
    %1670 = vmatprep.subr.mxu0 %v1669
    %v1671 = vand.u32 %v244, 4294901760
    %1672 = vmatpush1.xpose.msra.mxu0 %v1671
    %v1673 = vand.u32 %v247, 4294901760
    %1674 = vmatprep.subr.mxu0 %v1673
    %v1675 = vand.u32 %v246, 4294901760
    %1676 = vmatpush1.xpose.msra.mxu0 %v1675
    %v1677 = vand.u32 %v249, 4294901760
    %1678 = vmatprep.subr.mxu0 %v1677
    %v1679 = vand.u32 %v248, 4294901760
    %1680 = vmatpush1.xpose.msra.mxu0 %v1679
    %v1681 = vand.u32 %v251, 4294901760
    %1682 = vmatprep.subr.mxu0 %v1681
    %v1683 = vand.u32 %v250, 4294901760
    %1684 = vmatpush1.xpose.msra.mxu0 %v1683
    %v1685 = vand.u32 %v253, 4294901760
    %1686 = vmatprep.subr.mxu0 %v1685
    %v1687 = vand.u32 %v252, 4294901760
    %1688 = vmatpush1.xpose.msra.mxu0 %v1687
    %v1689 = vand.u32 %v255, 4294901760
    %1690 = vmatprep.subr.mxu0 %v1689
    %v1691 = vand.u32 %v254, 4294901760
    %1692 = vmatpush1.xpose.msra.mxu0 %v1691
    %v1693 = vand.u32 %v51, 4294901760
    %1694 = vmatprep.mubr.f32.mxu0 %v1693
    %v1695 = vand.u32 %v50, 4294901760
    %1696 = vmatmul.mubr.f32.gmra.mrb[0].mxu0 %v1695
    %v1697 = vpop.f32.mrb[0].mxu0
    %v1698 = vadd.f32 %v1537, %v1697
    %v1699 = vpop.f32.mrb[0].mxu0
    %v1700 = vadd.f32 %v1539, %v1699
    %v1701 = vand.u32 %v53, 4294901760
    %1702 = vmatprep.mubr.f32.mxu0 %v1701
    %v1703 = vand.u32 %v52, 4294901760
    %1704 = vmatmul.mubr.f32.gmra.mrb[0].mxu0 %v1703
    %v1705 = vpop.f32.mrb[0].mxu0
    %v1706 = vadd.f32 %v1545, %v1705
    %v1707 = vpop.f32.mrb[0].mxu0
    %v1708 = vadd.f32 %v1547, %v1707
    %v1709 = vand.u32 %v55, 4294901760
    %1710 = vmatprep.mubr.f32.mxu0 %v1709
    %v1711 = vand.u32 %v54, 4294901760
    %1712 = vmatmul.mubr.f32.gmra.mrb[0].mxu0 %v1711
    %v1713 = vpop.f32.mrb[0].mxu0
    %v1714 = vadd.f32 %v1553, %v1713
    %v1715 = vpop.f32.mrb[0].mxu0
    %v1716 = vadd.f32 %v1555, %v1715
    %v1717 = vand.u32 %v57, 4294901760
    %1718 = vmatprep.mubr.f32.mxu0 %v1717
    %v1719 = vand.u32 %v56, 4294901760
    %1720 = vmatmul.mubr.f32.gmra.mrb[0].mxu0 %v1719
    %v1721 = vpop.f32.mrb[0].mxu0
    %v1722 = vadd.f32 %v1561, %v1721
    %v1723 = vpop.f32.mrb[0].mxu0
    %v1724 = vadd.f32 %v1563, %v1723
    %1725 = vdwg.mxu0
    %p1726 = scmp.eq.s32.totalorder 0, 0
    // Predicated region
    $region18: #{tpu_custom_call.1} parent=1 // pred_check
      %p1727 = pneg %p1726
    $region19: #{tpu_custom_call.1} parent=1 // pred_check_branch
      %1729 = sbr.rel (%p1727) target = $region21
    $region20: #{tpu_custom_call.1} parent=1 // pred_region
      %1730 = vst [vmem:[#allocation7] sm:$0xff] %v1698
      %1731 = vst [vmem:[#allocation7 + $0x8] sm:$0xff] %v1700
      %1732 = vst [vmem:[#allocation7 + $0x10] sm:$0xff] %v1706
      %1733 = vst [vmem:[#allocation7 + $0x18] sm:$0xff] %v1708
      %1734 = vst [vmem:[#allocation7 + $0x20] sm:$0xff] %v1714
      %1735 = vst [vmem:[#allocation7 + $0x28] sm:$0xff] %v1716
      %1736 = vst [vmem:[#allocation7 + $0x30] sm:$0xff] %v1722
      %1737 = vst [vmem:[#allocation7 + $0x38] sm:$0xff] %v1724
    $region21: #{tpu_custom_call.1} parent=1 // pred_fallthru
      _
    %p1738 = scmp.gt.s32.totalorder 0, 0
    // Predicated region
    $region22: #{tpu_custom_call.1} parent=1 // pred_check
      %p1739 = pneg %p1738
    $region23: #{tpu_custom_call.1} parent=1 // pred_check_branch
      %1741 = sbr.rel (%p1739) target = $region25
    $region24: #{tpu_custom_call.1} parent=1 // pred_region
      %v1742 = vld [vmem:[#allocation7] sm:$0xff]
      %v1743 = vld [vmem:[#allocation7 + $0x8] sm:$0xff]
      %v1744 = vld [vmem:[#allocation7 + $0x10] sm:$0xff]
      %v1745 = vld [vmem:[#allocation7 + $0x18] sm:$0xff]
      %v1746 = vld [vmem:[#allocation7 + $0x20] sm:$0xff]
      %v1747 = vld [vmem:[#allocation7 + $0x28] sm:$0xff]
      %v1748 = vld [vmem:[#allocation7 + $0x30] sm:$0xff]
      %v1749 = vld [vmem:[#allocation7 + $0x38] sm:$0xff]
      %v1750 = vadd.f32 %v1742, %v1698
      %v1751 = vadd.f32 %v1743, %v1700
      %v1752 = vadd.f32 %v1744, %v1706
      %v1753 = vadd.f32 %v1745, %v1708
      %v1754 = vadd.f32 %v1746, %v1714
      %v1755 = vadd.f32 %v1747, %v1716
      %v1756 = vadd.f32 %v1748, %v1722
      %v1757 = vadd.f32 %v1749, %v1724
      %1758 = vst [vmem:[#allocation7] sm:$0xff] %v1750
      %1759 = vst [vmem:[#allocation7 + $0x8] sm:$0xff] %v1751
      %1760 = vst [vmem:[#allocation7 + $0x10] sm:$0xff] %v1752
      %1761 = vst [vmem:[#allocation7 + $0x18] sm:$0xff] %v1753
      %1762 = vst [vmem:[#allocation7 + $0x20] sm:$0xff] %v1754
      %1763 = vst [vmem:[#allocation7 + $0x28] sm:$0xff] %v1755
      %1764 = vst [vmem:[#allocation7 + $0x30] sm:$0xff] %v1756
      %1765 = vst [vmem:[#allocation7 + $0x38] sm:$0xff] %v1757
    $region25: #{tpu_custom_call.1} parent=1 // pred_fallthru
      _
    // Predicated region
    $region26: #{tpu_custom_call.1} parent=1 // pred_check
      _
    $region27: #{tpu_custom_call.1} parent=1 // pred_check_branch
      %1767 = sbr.rel (0) target = $region29
    $region28: #{tpu_custom_call.1} parent=1 // pred_region
      %s1769 = ssub.s32 1024, 1024
      %1770 = vsyncadd [#allocation4], %s1769
      %s1771 = sshll.u32 [#allocation7], 4
      %s1772 = int_to_ptr.vmem [resolvable:$true] %s1771
      %1777 = dma.vmem_to_hbm [thread:$0]  %s1772, 1024, %s2, [#allocation4], 256, 256, 16
    $region29: #{tpu_custom_call.1} parent=1 // pred_fallthru
      _
    // Predicated region
    $region30: #{tpu_custom_call.1} parent=1 // pred_check
      _
    $region31: #{tpu_custom_call.1} parent=1 // pred_check_branch
      %1779 = sbr.rel (0) target = $region33
    $region32: #{tpu_custom_call.1} parent=1 // pred_region
      %1780 = dma.done [#allocation4], 1024
    $region33: #{tpu_custom_call.1} parent=1 // pred_fallthru
      _
    %1781 = vsyncpa [#allocation3], 1
    %1782 = vsyncpa [#allocation6], 1
    %1783 = vsyncpa [#allocation4], 1

</llo_original>
